<compile_context>
chip_gen: v6e
topology: v6e:2x2x1
jax: 0.10.0
libtpu: 0.0.40
codegen_flags: <defaults>
</compile_context>

<pallas_src>
import functools

import jax
import jax.numpy as jnp
from jax import lax
from jax.experimental import pallas as pl
from jax.experimental.pallas import tpu as pltpu


# --------------------------------------------------------------------------------------
# GRU recurrence kernel (single invocation; whole sequence resident in VMEM).
# The input-gate projection gi[t] = x[t] @ W_ih + b_ih does not depend on the recurrent
# state, so it is hoisted into one big batched matmul in the wrapper; the kernel only runs
# the serial part of the recurrence.
# --------------------------------------------------------------------------------------
def _gru_seq_kernel(gi_ref, whh_ref, bhh_ref, seq_ref, hlast_ref):
    T, B, G = gi_ref.shape
    H = G // 3
    whh = whh_ref[...]                       # loop-invariant loads hoisted out of the loop
    bhh = bhh_ref[...]

    def step(t, h):
        gi = gi_ref[t]                       # (B, 3H) precomputed x_t @ W_ih + b_ih
        gh = jnp.dot(h, whh, preferred_element_type=jnp.float32) + bhh
        r = jax.nn.sigmoid(gi[:, 0 * H:1 * H] + gh[:, 0 * H:1 * H])
        z = jax.nn.sigmoid(gi[:, 1 * H:2 * H] + gh[:, 1 * H:2 * H])
        n = jnp.tanh(gi[:, 2 * H:3 * H] + r * gh[:, 2 * H:3 * H])
        h_new = (1.0 - z) * n + z * h
        seq_ref[t] = h_new
        return h_new

    h_last = lax.fori_loop(0, T, step, jnp.zeros((B, H), jnp.float32), unroll=True)
    hlast_ref[...] = h_last


def gru_encode(x_tbe, w_ih, w_hh, b_ih, b_hh):
    """x_tbe: (T, B, E) -> (outputs (T, B, H), final hidden (B, H))."""
    T, B, _ = x_tbe.shape
    H = w_hh.shape[0]
    # Hoisted input projection: one (T*B, E) @ (E, 3H) contraction handled by XLA.
    gi_all = jnp.einsum("tbe,eg->tbg", x_tbe, w_ih,
                        preferred_element_type=jnp.float32) + b_ih
    return pl.pallas_call(
        _gru_seq_kernel,
        out_shape=(jax.ShapeDtypeStruct((T, B, H), jnp.float32),
                   jax.ShapeDtypeStruct((B, H), jnp.float32)),
    )(gi_all, w_hh, b_hh)


# --------------------------------------------------------------------------------------
# Full teacher-forced decoder loop (single invocation, in-kernel time loop).
# Per step only the state-dependent work remains:
#   gi = gi_static[t] + attn_prev @ (W_pi_attn @ W_ih)        (folded prepare-input)
#   GRU gate math, attention scores/softmax/context, attention output.
# --------------------------------------------------------------------------------------
def _decoder_loop_kernel(gi_ref, keys_ref, kproj_ref, h0_ref,
                         wfold_ref, whh_ref, bhh_ref,
                         waoh_ref, waoc_ref, bao_ref,
                         out_ref):
    T, B, G = gi_ref.shape
    H = G // 3
    S = keys_ref.shape[1]
    A = waoh_ref.shape[1]
    OUTW = out_ref.shape[-1]

    keys = keys_ref[...]                     # (B, S, Ha)
    kproj = kproj_ref[...]                   # (B, S, H)  = keys @ W_att^T (hoisted)
    wfold = wfold_ref[...]                   # (A, 3H)    = W_pi_attn @ W_ih
    whh = whh_ref[...]
    bhh = bhh_ref[...]
    waoh = waoh_ref[...]
    waoc = waoc_ref[...]
    bao = bao_ref[...]

    pad = OUTW - (H + A + S)
    zero_pad = jnp.zeros((B, pad), jnp.float32) if pad > 0 else None

    def step(t, carry):
        h, attn = carry
        # GRU gate pre-activations: static part precomputed outside the kernel; only the
        # attention-feedback term is computed per step.
        gi = gi_ref[t] + jnp.dot(attn, wfold, preferred_element_type=jnp.float32)
        gh = jnp.dot(h, whh, preferred_element_type=jnp.float32) + bhh
        r = jax.nn.sigmoid(gi[:, 0 * H:1 * H] + gh[:, 0 * H:1 * H])
        z = jax.nn.sigmoid(gi[:, 1 * H:2 * H] + gh[:, 1 * H:2 * H])
        n = jnp.tanh(gi[:, 2 * H:3 * H] + r * gh[:, 2 * H:3 * H])
        h_new = (1.0 - z) * n + z * h

        # Luong "general" attention over the affect-encoder outputs as batched MXU
        # contractions (flash-attention style, q == 1).
        h3 = h_new[:, None, :]                                             # (B,1,H)
        s3 = jnp.einsum("bqh,bsh->bqs", h3, kproj,
                        preferred_element_type=jnp.float32)                # (B,1,S)
        m = jnp.max(s3, axis=-1, keepdims=True)
        e = jnp.exp(s3 - m)
        w3 = e * pl.reciprocal(jnp.sum(e, axis=-1, keepdims=True), approx=True)
        c3 = jnp.einsum("bqs,bsh->bqh", w3, keys,
                        preferred_element_type=jnp.float32)                # (B,1,Ha)
        context = c3[:, 0, :]                                              # (B, Ha)
        weight = w3[:, 0, :]                                               # (B, S)

        # attention output: split-concat -> two partial matmuls sharing the MXU pipeline
        attn_new = jnp.tanh(
            jnp.dot(h_new, waoh, preferred_element_type=jnp.float32)
            + jnp.dot(context, waoc, preferred_element_type=jnp.float32) + bao)

        # lane-dense combined output slab: [h | attn | weights | zero pad] -> 128-lane store
        pieces = [h_new, attn_new, weight]
        if zero_pad is not None:
            pieces.append(zero_pad)
        out_ref[t] = jnp.concatenate(pieces, axis=-1)
        return (h_new, attn_new)

    attn0 = jnp.zeros((B, A), jnp.float32)                                 # init_attn
    lax.fori_loop(0, T, step, (h0_ref[...], attn0), unroll=True)


def decoder_loop(gi_static, keys, keys_proj, h0, w_fold,
                 w_hh, b_hh, w_ao_h, w_ao_c, b_ao):
    T, B, _ = gi_static.shape
    S = keys.shape[1]
    H = w_hh.shape[0]
    A = w_ao_h.shape[1]
    out_w = ((H + A + S + 127) // 128) * 128
    slab = pl.pallas_call(
        _decoder_loop_kernel,
        out_shape=jax.ShapeDtypeStruct((T, B, out_w), jnp.float32),
    )(gi_static, keys, keys_proj, h0, w_fold, w_hh, b_hh, w_ao_h, w_ao_c, b_ao)
    return slab[:, :, :H + A], slab[:, :, H + A:H + A + S]


# --------------------------------------------------------------------------------------
# Projector: row-tiled Linear + Softmax(-1). bf16 MXU operands, f32 accumulate/softmax.
# --------------------------------------------------------------------------------------
def _proj_softmax_kernel(x_ref, w_ref, b_ref, o_ref):
    logits = (jnp.dot(x_ref[...], w_ref[...],
                      preferred_element_type=jnp.float32) + b_ref[...])
    m = jnp.max(logits, axis=-1, keepdims=True)
    e = jnp.exp(logits - m)
    o_ref[...] = e * pl.reciprocal(jnp.sum(e, axis=-1, keepdims=True), approx=True)


def proj_softmax(x, w, b, row_block=128):
    """x: (R, F), w: (F, V), b: (1, V) -> softmax(x @ w + b) as (R, V) f32."""
    R, F = x.shape
    V = w.shape[1]
    rb = min(row_block, ((R + 7) // 8) * 8)
    r_pad = ((R + rb - 1) // rb) * rb
    if r_pad != R:
        x = jnp.pad(x, ((0, r_pad - R), (0, 0)))
    xb = x.astype(jnp.bfloat16)
    wb = w.astype(jnp.bfloat16)
    out = pl.pallas_call(
        _proj_softmax_kernel,
        out_shape=jax.ShapeDtypeStruct((r_pad, V), jnp.float32),
        grid=(r_pad // rb,),
        in_specs=[pl.BlockSpec((rb, F), lambda i: (i, 0)),
                  pl.BlockSpec((F, V), lambda i: (0, 0)),
                  pl.BlockSpec((1, V), lambda i: (0, 0))],
        out_specs=pl.BlockSpec((rb, V), lambda i: (i, 0)),
        compiler_params=pltpu.CompilerParams(
            dimension_semantics=("parallel",),
            vmem_limit_bytes=32 * 1024 * 1024),
    )(xb, wb, b)
    # TODO(synk): for very large num_vocab also tile the vocab axis with a two-pass softmax.
    return out[:R]


# --------------------------------------------------------------------------------------
# Parameter init (deterministic, synthetic)
# --------------------------------------------------------------------------------------
def init_params(key, cfg):
    ks = iter(jax.random.split(key, 32))
    nrm = lambda shape, scale=0.1: scale * jax.random.normal(next(ks), shape, jnp.float32)

    V, E, AE = cfg["num_vocab"], cfg["embedding_size"], cfg["affect_embedding_size"]
    H, Ha = cfg["encoder_decoder_output_size"], cfg["affect_encoder_output_size"]
    A, Din = cfg["attention_size"], cfg["decoder_input_size"]
    pad = cfg["pad_id"]

    emb = nrm((V, E)).at[pad].set(0.0)
    aff_emb = nrm((V, AE)).at[pad].set(0.0)

    p = {
        "embedding": emb,
        "affect_embedding": aff_emb,
        # encoder GRU
        "enc_w_ih": nrm((E, 3 * H)), "enc_w_hh": nrm((H, 3 * H)),
        "enc_b_ih": nrm((1, 3 * H)), "enc_b_hh": nrm((1, 3 * H)),
        # affect encoder GRU
        "aff_w_ih": nrm((AE, 3 * Ha)), "aff_w_hh": nrm((Ha, 3 * Ha)),
        "aff_b_ih": nrm((1, 3 * Ha)), "aff_b_hh": nrm((1, 3 * Ha)),
        # prepare_state Linear(H + Ha -> H)
        "ps_w": nrm((H + Ha, H)), "ps_b": nrm((1, H)),
        # linear_prepare_input Linear(E + Ha + A -> Din)
        "pi_w": nrm((E + Ha + A, Din)), "pi_b": nrm((1, Din)),
        # decoder GRU
        "dec_w_ih": nrm((Din, 3 * H)), "dec_w_hh": nrm((H, 3 * H)),
        "dec_b_ih": nrm((1, 3 * H)), "dec_b_hh": nrm((1, 3 * H)),
        # attention (general) + output projection
        "att_w": nrm((H, Ha)), "att_out_w": nrm((H + Ha, A)), "att_out_b": nrm((1, A)),
        # projector Linear(H + A -> V) + Softmax
        "proj_w": nrm((H + A, V)), "proj_b": nrm((1, V)),
    }
    return p


# --------------------------------------------------------------------------------------
# Full forward pass (inference=False / teacher forcing path)
# --------------------------------------------------------------------------------------
def model_forward(params, cfg, id_posts, len_posts, id_responses):
    del len_posts  # TODO(synk): pack_padded_sequence length masking omitted; all posts use full length S.
    B, S = id_posts.shape
    V = cfg["num_vocab"]
    E = cfg["embedding_size"]
    H = cfg["encoder_decoder_output_size"]
    Ha = cfg["affect_encoder_output_size"]
    A = cfg["attention_size"]

    # Embedding gathers directly in time-major order (only tiny int32 id matrices transposed).
    ids_post_t = id_posts.T                                     # (S, B)
    ids_dec_t = id_responses[:, :-1].T                          # (T, B)
    embed_posts_t = params["embedding"][ids_post_t]             # (S, B, E)
    affect_posts_t = params["affect_embedding"][ids_post_t]     # (S, B, AE)
    dec_in = params["embedding"][ids_dec_t]                     # (T, B, E)

    # Encoders (serial recurrences as Pallas kernels; input projections hoisted).
    _, enc_h = gru_encode(embed_posts_t,
                          params["enc_w_ih"], params["enc_w_hh"],
                          params["enc_b_ih"], params["enc_b_hh"])
    aff_out, aff_h = gru_encode(affect_posts_t,
                                params["aff_w_ih"], params["aff_w_hh"],
                                params["aff_b_ih"], params["aff_b_hh"])

    # TODO(synk): with length masking, context_affect should be the last *valid* timestep.
    context_affect = aff_out[-1]                                # (B, Ha)

    # ----- loop-invariant precomputes for the decoder (hoisted out of the time loop) -----
    # prepare_state (split-concat): h0 = enc_h @ W_ps_h + aff_h @ W_ps_a + b_ps
    h0 = enc_h @ params["ps_w"][:H] + aff_h @ params["ps_w"][H:] + params["ps_b"]

    # linear_prepare_input folded into the decoder-GRU input projection:
    #   gi_t = ([x_t | ctx | attn] @ W_pi + b_pi) @ W_ih + b_ih
    #        = gi_static[t] + attn @ (W_pi_attn @ W_ih)
    w_pi_x = params["pi_w"][:E]
    w_pi_c = params["pi_w"][E:E + Ha]
    w_pi_a = params["pi_w"][E + Ha:]
    prep_static = (jnp.einsum("tbe,ed->tbd", dec_in, w_pi_x,
                              preferred_element_type=jnp.float32)
                   + (context_affect @ w_pi_c + params["pi_b"])[None])
    gi_static = (jnp.einsum("tbd,dg->tbg", prep_static, params["dec_w_ih"],
                            preferred_element_type=jnp.float32)
                 + params["dec_b_ih"])                          # (T, B, 3H)
    w_fold = w_pi_a @ params["dec_w_ih"]                        # (A, 3H)

    # Attention keys and pre-projected keys (hoists h @ W_att out of the per-step loop).
    keys = jnp.transpose(aff_out, (1, 0, 2))                    # (B, S, Ha)  (tiny)
    keys_proj = jnp.einsum("bsh,gh->bsg", keys, params["att_w"],
                           preferred_element_type=jnp.float32)  # (B, S, H)

    w_ao_h = params["att_out_w"][:H]
    w_ao_c = params["att_out_w"][H:]

    outs, wts = decoder_loop(gi_static, keys, keys_proj, h0, w_fold,
                             params["dec_w_hh"], params["dec_b_hh"],
                             w_ao_h, w_ao_c, params["att_out_b"])
    T = outs.shape[0]

    probs = proj_softmax(outs.reshape(T * B, H + A),
                         params["proj_w"], params["proj_b"])
    output_vocab = probs.reshape(T, B, V).transpose(1, 0, 2)    # (B, T, V)
    weights = wts.transpose(1, 0, 2)                            # (B, T, S)
    return output_vocab, weights


# --------------------------------------------------------------------------------------
if __name__ == "__main__":
    cfg = dict(
        num_vocab=64, pad_id=0, start_id=1, end_id=2,
        embedding_size=32, affect_embedding_size=16,
        encoder_decoder_output_size=32, affect_encoder_output_size=32,
        attention_size=32, decoder_input_size=32,
        encoder_decoder_num_layers=1, encoder_bidirectional=False,
        encoder_decoder_cell_type="GRU", attention_type="general", dropout=0.0,
    )
    B, S = 2, 8

    key = jax.random.PRNGKey(0)
    kp, k1, k2 = jax.random.split(key, 3)
    params = init_params(kp, cfg)

    id_posts = jax.random.randint(k1, (B, S), 1, cfg["num_vocab"], dtype=jnp.int32)
    id_responses = jax.random.randint(k2, (B, S), 1, cfg["num_vocab"], dtype=jnp.int32)
    len_posts = jnp.full((B,), S, dtype=jnp.int32)

    fwd = functools.partial(model_forward, params, cfg)
    output_vocab, weights = fwd(id_posts, len_posts, id_responses)
    jax.block_until_ready((output_vocab, weights))

    T = S - 1
    assert output_vocab.shape == (B, T, cfg["num_vocab"]), output_vocab.shape
    assert weights.shape == (B, T, S), weights.shape
    assert bool(jnp.all(jnp.isfinite(output_vocab)))
    assert bool(jnp.all(jnp.isfinite(weights)))
    # softmax rows sum to 1 (approx-reciprocal denominator -> loose tolerance)
    assert bool(jnp.allclose(jnp.sum(output_vocab, axis=-1), 1.0, atol=1e-2))
    assert bool(jnp.allclose(jnp.sum(weights, axis=-1), 1.0, atol=1e-2))

    print("KERNEL_OK")
</pallas_src>

<mosaic_0001>
module attributes {stable_mosaic.version = 11 : i64} {
  func.func @_gru_seq_kernel(%arg0: memref<8x2x96xf32, #tpu.memory_space<vmem>>, %arg1: memref<32x96xf32, #tpu.memory_space<vmem>>, %arg2: memref<1x96xf32, #tpu.memory_space<vmem>>, %arg3: memref<8x2x32xf32, #tpu.memory_space<vmem>>, %arg4: memref<2x32xf32, #tpu.memory_space<vmem>>) attributes {dimension_semantics = [], scalar_prefetch = 0 : i64, scratch_operands = 0 : i64, tpu.core_type = #tpu.core_type<tc>} {
    %c0 = arith.constant 0 : index
    %c0_0 = arith.constant 0 : index
    %0 = vector.load %arg1[%c0, %c0_0] : memref<32x96xf32, #tpu.memory_space<vmem>>, vector<32x96xf32>
    %c0_1 = arith.constant 0 : index
    %c0_2 = arith.constant 0 : index
    %1 = vector.load %arg2[%c0_1, %c0_2] : memref<1x96xf32, #tpu.memory_space<vmem>>, vector<1x96xf32>
    %cst = arith.constant 0.000000e+00 : f32
    %2 = vector.broadcast %cst : f32 to vector<2x32xf32>
    %c0_i32 = arith.constant 0 : i32
    %3 = arith.index_cast %c0_i32 : i32 to index
    %c0_3 = arith.constant 0 : index
    %c0_4 = arith.constant 0 : index
    %4 = vector.load %arg0[%3, %c0_3, %c0_4] : memref<8x2x96xf32, #tpu.memory_space<vmem>>, vector<1x2x96xf32>
    %5 = vector.shape_cast %4 : vector<1x2x96xf32> to vector<2x96xf32>
    %cst_5 = arith.constant dense<0.000000e+00> : vector<2x96xf32>
    %6 = tpu.matmul %2, %0, %cst_5 {dimension_numbers = #tpu.dot_dimension_numbers<[1], [0], [0], [1], [0, 0, 1, 1], [], []>} : vector<2x32xf32>, vector<32x96xf32>, vector<2x96xf32> -> vector<2x96xf32>
    %7 = vector.broadcast %1 : vector<1x96xf32> to vector<2x96xf32>
    %8 = arith.addf %6, %7 : vector<2x96xf32>
    %9 = vector.extract_strided_slice %5 {offsets = [0, 0], sizes = [2, 32], strides = [1, 1]} : vector<2x96xf32> to vector<2x32xf32>
    %10 = vector.extract_strided_slice %8 {offsets = [0, 0], sizes = [2, 32], strides = [1, 1]} : vector<2x96xf32> to vector<2x32xf32>
    %11 = arith.addf %9, %10 : vector<2x32xf32>
    %12 = arith.negf %11 : vector<2x32xf32>
    %13 = math.exp %12 : vector<2x32xf32>
    %cst_6 = arith.constant 1.000000e+00 : f32
    %14 = vector.broadcast %cst_6 : f32 to vector<2x32xf32>
    %15 = arith.addf %14, %13 : vector<2x32xf32>
    %16 = arith.divf %14, %15 : vector<2x32xf32>
    %17 = vector.extract_strided_slice %5 {offsets = [0, 32], sizes = [2, 32], strides = [1, 1]} : vector<2x96xf32> to vector<2x32xf32>
    %18 = vector.extract_strided_slice %8 {offsets = [0, 32], sizes = [2, 32], strides = [1, 1]} : vector<2x96xf32> to vector<2x32xf32>
    %19 = arith.addf %17, %18 : vector<2x32xf32>
    %20 = arith.negf %19 : vector<2x32xf32>
    %21 = math.exp %20 : vector<2x32xf32>
    %cst_7 = arith.constant 1.000000e+00 : f32
    %22 = vector.broadcast %cst_7 : f32 to vector<2x32xf32>
    %23 = arith.addf %22, %21 : vector<2x32xf32>
    %24 = arith.divf %22, %23 : vector<2x32xf32>
    %25 = vector.extract_strided_slice %5 {offsets = [0, 64], sizes = [2, 32], strides = [1, 1]} : vector<2x96xf32> to vector<2x32xf32>
    %26 = vector.extract_strided_slice %8 {offsets = [0, 64], sizes = [2, 32], strides = [1, 1]} : vector<2x96xf32> to vector<2x32xf32>
    %27 = arith.mulf %16, %26 : vector<2x32xf32>
    %28 = arith.addf %25, %27 : vector<2x32xf32>
    %29 = math.tanh %28 : vector<2x32xf32>
    %cst_8 = arith.constant 1.000000e+00 : f32
    %30 = vector.broadcast %cst_8 : f32 to vector<2x32xf32>
    %31 = arith.subf %30, %24 : vector<2x32xf32>
    %32 = arith.mulf %31, %29 : vector<2x32xf32>
    %33 = arith.mulf %24, %2 : vector<2x32xf32>
    %34 = arith.addf %32, %33 : vector<2x32xf32>
    %35 = arith.index_cast %c0_i32 : i32 to index
    %c0_9 = arith.constant 0 : index
    %c0_10 = arith.constant 0 : index
    %36 = vector.load %arg3[%35, %c0_9, %c0_10] : memref<8x2x32xf32, #tpu.memory_space<vmem>>, vector<1x2x32xf32>
    %37 = vector.shape_cast %36 : vector<1x2x32xf32> to vector<2x32xf32>
    %38 = vector.shape_cast %34 : vector<2x32xf32> to vector<1x2x32xf32>
    tpu.vector_store %arg3[%35, %c0_9, %c0_10], %38 {strides = array<i32>} : memref<8x2x32xf32, #tpu.memory_space<vmem>>, vector<1x2x32xf32>,
    %c1_i32 = arith.constant 1 : i32
    %39 = arith.index_cast %c1_i32 : i32 to index
    %c0_11 = arith.constant 0 : index
    %c0_12 = arith.constant 0 : index
    %40 = vector.load %arg0[%39, %c0_11, %c0_12] : memref<8x2x96xf32, #tpu.memory_space<vmem>>, vector<1x2x96xf32>
    %41 = vector.shape_cast %40 : vector<1x2x96xf32> to vector<2x96xf32>
    %cst_13 = arith.constant dense<0.000000e+00> : vector<2x96xf32>
    %42 = tpu.matmul %34, %0, %cst_13 {dimension_numbers = #tpu.dot_dimension_numbers<[1], [0], [0], [1], [0, 0, 1, 1], [], []>} : vector<2x32xf32>, vector<32x96xf32>, vector<2x96xf32> -> vector<2x96xf32>
    %43 = vector.broadcast %1 : vector<1x96xf32> to vector<2x96xf32>
    %44 = arith.addf %42, %43 : vector<2x96xf32>
    %45 = vector.extract_strided_slice %41 {offsets = [0, 0], sizes = [2, 32], strides = [1, 1]} : vector<2x96xf32> to vector<2x32xf32>
    %46 = vector.extract_strided_slice %44 {offsets = [0, 0], sizes = [2, 32], strides = [1, 1]} : vector<2x96xf32> to vector<2x32xf32>
    %47 = arith.addf %45, %46 : vector<2x32xf32>
    %48 = arith.negf %47 : vector<2x32xf32>
    %49 = math.exp %48 : vector<2x32xf32>
    %cst_14 = arith.constant 1.000000e+00 : f32
    %50 = vector.broadcast %cst_14 : f32 to vector<2x32xf32>
    %51 = arith.addf %50, %49 : vector<2x32xf32>
    %52 = arith.divf %50, %51 : vector<2x32xf32>
    %53 = vector.extract_strided_slice %41 {offsets = [0, 32], sizes = [2, 32], strides = [1, 1]} : vector<2x96xf32> to vector<2x32xf32>
    %54 = vector.extract_strided_slice %44 {offsets = [0, 32], sizes = [2, 32], strides = [1, 1]} : vector<2x96xf32> to vector<2x32xf32>
    %55 = arith.addf %53, %54 : vector<2x32xf32>
    %56 = arith.negf %55 : vector<2x32xf32>
    %57 = math.exp %56 : vector<2x32xf32>
    %cst_15 = arith.constant 1.000000e+00 : f32
    %58 = vector.broadcast %cst_15 : f32 to vector<2x32xf32>
    %59 = arith.addf %58, %57 : vector<2x32xf32>
    %60 = arith.divf %58, %59 : vector<2x32xf32>
    %61 = vector.extract_strided_slice %41 {offsets = [0, 64], sizes = [2, 32], strides = [1, 1]} : vector<2x96xf32> to vector<2x32xf32>
    %62 = vector.extract_strided_slice %44 {offsets = [0, 64], sizes = [2, 32], strides = [1, 1]} : vector<2x96xf32> to vector<2x32xf32>
    %63 = arith.mulf %52, %62 : vector<2x32xf32>
    %64 = arith.addf %61, %63 : vector<2x32xf32>
    %65 = math.tanh %64 : vector<2x32xf32>
    %cst_16 = arith.constant 1.000000e+00 : f32
    %66 = vector.broadcast %cst_16 : f32 to vector<2x32xf32>
    %67 = arith.subf %66, %60 : vector<2x32xf32>
    %68 = arith.mulf %67, %65 : vector<2x32xf32>
    %69 = arith.mulf %60, %34 : vector<2x32xf32>
    %70 = arith.addf %68, %69 : vector<2x32xf32>
    %71 = arith.index_cast %c1_i32 : i32 to index
    %c0_17 = arith.constant 0 : index
    %c0_18 = arith.constant 0 : index
    %72 = vector.load %arg3[%71, %c0_17, %c0_18] : memref<8x2x32xf32, #tpu.memory_space<vmem>>, vector<1x2x32xf32>
    %73 = vector.shape_cast %72 : vector<1x2x32xf32> to vector<2x32xf32>
    %74 = vector.shape_cast %70 : vector<2x32xf32> to vector<1x2x32xf32>
    tpu.vector_store %arg3[%71, %c0_17, %c0_18], %74 {strides = array<i32>} : memref<8x2x32xf32, #tpu.memory_space<vmem>>, vector<1x2x32xf32>,
    %c2_i32 = arith.constant 2 : i32
    %75 = arith.index_cast %c2_i32 : i32 to index
    %c0_19 = arith.constant 0 : index
    %c0_20 = arith.constant 0 : index
    %76 = vector.load %arg0[%75, %c0_19, %c0_20] : memref<8x2x96xf32, #tpu.memory_space<vmem>>, vector<1x2x96xf32>
    %77 = vector.shape_cast %76 : vector<1x2x96xf32> to vector<2x96xf32>
    %cst_21 = arith.constant dense<0.000000e+00> : vector<2x96xf32>
    %78 = tpu.matmul %70, %0, %cst_21 {dimension_numbers = #tpu.dot_dimension_numbers<[1], [0], [0], [1], [0, 0, 1, 1], [], []>} : vector<2x32xf32>, vector<32x96xf32>, vector<2x96xf32> -> vector<2x96xf32>
    %79 = vector.broadcast %1 : vector<1x96xf32> to vector<2x96xf32>
    %80 = arith.addf %78, %79 : vector<2x96xf32>
    %81 = vector.extract_strided_slice %77 {offsets = [0, 0], sizes = [2, 32], strides = [1, 1]} : vector<2x96xf32> to vector<2x32xf32>
    %82 = vector.extract_strided_slice %80 {offsets = [0, 0], sizes = [2, 32], strides = [1, 1]} : vector<2x96xf32> to vector<2x32xf32>
    %83 = arith.addf %81, %82 : vector<2x32xf32>
    %84 = arith.negf %83 : vector<2x32xf32>
    %85 = math.exp %84 : vector<2x32xf32>
    %cst_22 = arith.constant 1.000000e+00 : f32
    %86 = vector.broadcast %cst_22 : f32 to vector<2x32xf32>
    %87 = arith.addf %86, %85 : vector<2x32xf32>
    %88 = arith.divf %86, %87 : vector<2x32xf32>
    %89 = vector.extract_strided_slice %77 {offsets = [0, 32], sizes = [2, 32], strides = [1, 1]} : vector<2x96xf32> to vector<2x32xf32>
    %90 = vector.extract_strided_slice %80 {offsets = [0, 32], sizes = [2, 32], strides = [1, 1]} : vector<2x96xf32> to vector<2x32xf32>
    %91 = arith.addf %89, %90 : vector<2x32xf32>
    %92 = arith.negf %91 : vector<2x32xf32>
    %93 = math.exp %92 : vector<2x32xf32>
    %cst_23 = arith.constant 1.000000e+00 : f32
    %94 = vector.broadcast %cst_23 : f32 to vector<2x32xf32>
    %95 = arith.addf %94, %93 : vector<2x32xf32>
    %96 = arith.divf %94, %95 : vector<2x32xf32>
    %97 = vector.extract_strided_slice %77 {offsets = [0, 64], sizes = [2, 32], strides = [1, 1]} : vector<2x96xf32> to vector<2x32xf32>
    %98 = vector.extract_strided_slice %80 {offsets = [0, 64], sizes = [2, 32], strides = [1, 1]} : vector<2x96xf32> to vector<2x32xf32>
    %99 = arith.mulf %88, %98 : vector<2x32xf32>
    %100 = arith.addf %97, %99 : vector<2x32xf32>
    %101 = math.tanh %100 : vector<2x32xf32>
    %cst_24 = arith.constant 1.000000e+00 : f32
    %102 = vector.broadcast %cst_24 : f32 to vector<2x32xf32>
    %103 = arith.subf %102, %96 : vector<2x32xf32>
    %104 = arith.mulf %103, %101 : vector<2x32xf32>
    %105 = arith.mulf %96, %70 : vector<2x32xf32>
    %106 = arith.addf %104, %105 : vector<2x32xf32>
    %107 = arith.index_cast %c2_i32 : i32 to index
    %c0_25 = arith.constant 0 : index
    %c0_26 = arith.constant 0 : index
    %108 = vector.load %arg3[%107, %c0_25, %c0_26] : memref<8x2x32xf32, #tpu.memory_space<vmem>>, vector<1x2x32xf32>
    %109 = vector.shape_cast %108 : vector<1x2x32xf32> to vector<2x32xf32>
    %110 = vector.shape_cast %106 : vector<2x32xf32> to vector<1x2x32xf32>
    tpu.vector_store %arg3[%107, %c0_25, %c0_26], %110 {strides = array<i32>} : memref<8x2x32xf32, #tpu.memory_space<vmem>>, vector<1x2x32xf32>,
    %c3_i32 = arith.constant 3 : i32
    %111 = arith.index_cast %c3_i32 : i32 to index
    %c0_27 = arith.constant 0 : index
    %c0_28 = arith.constant 0 : index
    %112 = vector.load %arg0[%111, %c0_27, %c0_28] : memref<8x2x96xf32, #tpu.memory_space<vmem>>, vector<1x2x96xf32>
    %113 = vector.shape_cast %112 : vector<1x2x96xf32> to vector<2x96xf32>
    %cst_29 = arith.constant dense<0.000000e+00> : vector<2x96xf32>
    %114 = tpu.matmul %106, %0, %cst_29 {dimension_numbers = #tpu.dot_dimension_numbers<[1], [0], [0], [1], [0, 0, 1, 1], [], []>} : vector<2x32xf32>, vector<32x96xf32>, vector<2x96xf32> -> vector<2x96xf32>
    %115 = vector.broadcast %1 : vector<1x96xf32> to vector<2x96xf32>
    %116 = arith.addf %114, %115 : vector<2x96xf32>
    %117 = vector.extract_strided_slice %113 {offsets = [0, 0], sizes = [2, 32], strides = [1, 1]} : vector<2x96xf32> to vector<2x32xf32>
    %118 = vector.extract_strided_slice %116 {offsets = [0, 0], sizes = [2, 32], strides = [1, 1]} : vector<2x96xf32> to vector<2x32xf32>
    %119 = arith.addf %117, %118 : vector<2x32xf32>
    %120 = arith.negf %119 : vector<2x32xf32>
    %121 = math.exp %120 : vector<2x32xf32>
    %cst_30 = arith.constant 1.000000e+00 : f32
    %122 = vector.broadcast %cst_30 : f32 to vector<2x32xf32>
    %123 = arith.addf %122, %121 : vector<2x32xf32>
    %124 = arith.divf %122, %123 : vector<2x32xf32>
    %125 = vector.extract_strided_slice %113 {offsets = [0, 32], sizes = [2, 32], strides = [1, 1]} : vector<2x96xf32> to vector<2x32xf32>
    %126 = vector.extract_strided_slice %116 {offsets = [0, 32], sizes = [2, 32], strides = [1, 1]} : vector<2x96xf32> to vector<2x32xf32>
    %127 = arith.addf %125, %126 : vector<2x32xf32>
    %128 = arith.negf %127 : vector<2x32xf32>
    %129 = math.exp %128 : vector<2x32xf32>
    %cst_31 = arith.constant 1.000000e+00 : f32
    %130 = vector.broadcast %cst_31 : f32 to vector<2x32xf32>
    %131 = arith.addf %130, %129 : vector<2x32xf32>
    %132 = arith.divf %130, %131 : vector<2x32xf32>
    %133 = vector.extract_strided_slice %113 {offsets = [0, 64], sizes = [2, 32], strides = [1, 1]} : vector<2x96xf32> to vector<2x32xf32>
    %134 = vector.extract_strided_slice %116 {offsets = [0, 64], sizes = [2, 32], strides = [1, 1]} : vector<2x96xf32> to vector<2x32xf32>
    %135 = arith.mulf %124, %134 : vector<2x32xf32>
    %136 = arith.addf %133, %135 : vector<2x32xf32>
    %137 = math.tanh %136 : vector<2x32xf32>
    %cst_32 = arith.constant 1.000000e+00 : f32
    %138 = vector.broadcast %cst_32 : f32 to vector<2x32xf32>
    %139 = arith.subf %138, %132 : vector<2x32xf32>
    %140 = arith.mulf %139, %137 : vector<2x32xf32>
    %141 = arith.mulf %132, %106 : vector<2x32xf32>
    %142 = arith.addf %140, %141 : vector<2x32xf32>
    %143 = arith.index_cast %c3_i32 : i32 to index
    %c0_33 = arith.constant 0 : index
    %c0_34 = arith.constant 0 : index
    %144 = vector.load %arg3[%143, %c0_33, %c0_34] : memref<8x2x32xf32, #tpu.memory_space<vmem>>, vector<1x2x32xf32>
    %145 = vector.shape_cast %144 : vector<1x2x32xf32> to vector<2x32xf32>
    %146 = vector.shape_cast %142 : vector<2x32xf32> to vector<1x2x32xf32>
    tpu.vector_store %arg3[%143, %c0_33, %c0_34], %146 {strides = array<i32>} : memref<8x2x32xf32, #tpu.memory_space<vmem>>, vector<1x2x32xf32>,
    %c4_i32 = arith.constant 4 : i32
    %147 = arith.index_cast %c4_i32 : i32 to index
    %c0_35 = arith.constant 0 : index
    %c0_36 = arith.constant 0 : index
    %148 = vector.load %arg0[%147, %c0_35, %c0_36] : memref<8x2x96xf32, #tpu.memory_space<vmem>>, vector<1x2x96xf32>
    %149 = vector.shape_cast %148 : vector<1x2x96xf32> to vector<2x96xf32>
    %cst_37 = arith.constant dense<0.000000e+00> : vector<2x96xf32>
    %150 = tpu.matmul %142, %0, %cst_37 {dimension_numbers = #tpu.dot_dimension_numbers<[1], [0], [0], [1], [0, 0, 1, 1], [], []>} : vector<2x32xf32>, vector<32x96xf32>, vector<2x96xf32> -> vector<2x96xf32>
    %151 = vector.broadcast %1 : vector<1x96xf32> to vector<2x96xf32>
    %152 = arith.addf %150, %151 : vector<2x96xf32>
    %153 = vector.extract_strided_slice %149 {offsets = [0, 0], sizes = [2, 32], strides = [1, 1]} : vector<2x96xf32> to vector<2x32xf32>
    %154 = vector.extract_strided_slice %152 {offsets = [0, 0], sizes = [2, 32], strides = [1, 1]} : vector<2x96xf32> to vector<2x32xf32>
    %155 = arith.addf %153, %154 : vector<2x32xf32>
    %156 = arith.negf %155 : vector<2x32xf32>
    %157 = math.exp %156 : vector<2x32xf32>
    %cst_38 = arith.constant 1.000000e+00 : f32
    %158 = vector.broadcast %cst_38 : f32 to vector<2x32xf32>
    %159 = arith.addf %158, %157 : vector<2x32xf32>
    %160 = arith.divf %158, %159 : vector<2x32xf32>
    %161 = vector.extract_strided_slice %149 {offsets = [0, 32], sizes = [2, 32], strides = [1, 1]} : vector<2x96xf32> to vector<2x32xf32>
    %162 = vector.extract_strided_slice %152 {offsets = [0, 32], sizes = [2, 32], strides = [1, 1]} : vector<2x96xf32> to vector<2x32xf32>
    %163 = arith.addf %161, %162 : vector<2x32xf32>
    %164 = arith.negf %163 : vector<2x32xf32>
    %165 = math.exp %164 : vector<2x32xf32>
    %cst_39 = arith.constant 1.000000e+00 : f32
    %166 = vector.broadcast %cst_39 : f32 to vector<2x32xf32>
    %167 = arith.addf %166, %165 : vector<2x32xf32>
    %168 = arith.divf %166, %167 : vector<2x32xf32>
    %169 = vector.extract_strided_slice %149 {offsets = [0, 64], sizes = [2, 32], strides = [1, 1]} : vector<2x96xf32> to vector<2x32xf32>
    %170 = vector.extract_strided_slice %152 {offsets = [0, 64], sizes = [2, 32], strides = [1, 1]} : vector<2x96xf32> to vector<2x32xf32>
    %171 = arith.mulf %160, %170 : vector<2x32xf32>
    %172 = arith.addf %169, %171 : vector<2x32xf32>
    %173 = math.tanh %172 : vector<2x32xf32>
    %cst_40 = arith.constant 1.000000e+00 : f32
    %174 = vector.broadcast %cst_40 : f32 to vector<2x32xf32>
    %175 = arith.subf %174, %168 : vector<2x32xf32>
    %176 = arith.mulf %175, %173 : vector<2x32xf32>
    %177 = arith.mulf %168, %142 : vector<2x32xf32>
    %178 = arith.addf %176, %177 : vector<2x32xf32>
    %179 = arith.index_cast %c4_i32 : i32 to index
    %c0_41 = arith.constant 0 : index
    %c0_42 = arith.constant 0 : index
    %180 = vector.load %arg3[%179, %c0_41, %c0_42] : memref<8x2x32xf32, #tpu.memory_space<vmem>>, vector<1x2x32xf32>
    %181 = vector.shape_cast %180 : vector<1x2x32xf32> to vector<2x32xf32>
    %182 = vector.shape_cast %178 : vector<2x32xf32> to vector<1x2x32xf32>
    tpu.vector_store %arg3[%179, %c0_41, %c0_42], %182 {strides = array<i32>} : memref<8x2x32xf32, #tpu.memory_space<vmem>>, vector<1x2x32xf32>,
    %c5_i32 = arith.constant 5 : i32
    %183 = arith.index_cast %c5_i32 : i32 to index
    %c0_43 = arith.constant 0 : index
    %c0_44 = arith.constant 0 : index
    %184 = vector.load %arg0[%183, %c0_43, %c0_44] : memref<8x2x96xf32, #tpu.memory_space<vmem>>, vector<1x2x96xf32>
    %185 = vector.shape_cast %184 : vector<1x2x96xf32> to vector<2x96xf32>
    %cst_45 = arith.constant dense<0.000000e+00> : vector<2x96xf32>
    %186 = tpu.matmul %178, %0, %cst_45 {dimension_numbers = #tpu.dot_dimension_numbers<[1], [0], [0], [1], [0, 0, 1, 1], [], []>} : vector<2x32xf32>, vector<32x96xf32>, vector<2x96xf32> -> vector<2x96xf32>
    %187 = vector.broadcast %1 : vector<1x96xf32> to vector<2x96xf32>
    %188 = arith.addf %186, %187 : vector<2x96xf32>
    %189 = vector.extract_strided_slice %185 {offsets = [0, 0], sizes = [2, 32], strides = [1, 1]} : vector<2x96xf32> to vector<2x32xf32>
    %190 = vector.extract_strided_slice %188 {offsets = [0, 0], sizes = [2, 32], strides = [1, 1]} : vector<2x96xf32> to vector<2x32xf32>
    %191 = arith.addf %189, %190 : vector<2x32xf32>
    %192 = arith.negf %191 : vector<2x32xf32>
    %193 = math.exp %192 : vector<2x32xf32>
    %cst_46 = arith.constant 1.000000e+00 : f32
    %194 = vector.broadcast %cst_46 : f32 to vector<2x32xf32>
    %195 = arith.addf %194, %193 : vector<2x32xf32>
    %196 = arith.divf %194, %195 : vector<2x32xf32>
    %197 = vector.extract_strided_slice %185 {offsets = [0, 32], sizes = [2, 32], strides = [1, 1]} : vector<2x96xf32> to vector<2x32xf32>
    %198 = vector.extract_strided_slice %188 {offsets = [0, 32], sizes = [2, 32], strides = [1, 1]} : vector<2x96xf32> to vector<2x32xf32>
    %199 = arith.addf %197, %198 : vector<2x32xf32>
    %200 = arith.negf %199 : vector<2x32xf32>
    %201 = math.exp %200 : vector<2x32xf32>
    %cst_47 = arith.constant 1.000000e+00 : f32
    %202 = vector.broadcast %cst_47 : f32 to vector<2x32xf32>
    %203 = arith.addf %202, %201 : vector<2x32xf32>
    %204 = arith.divf %202, %203 : vector<2x32xf32>
    %205 = vector.extract_strided_slice %185 {offsets = [0, 64], sizes = [2, 32], strides = [1, 1]} : vector<2x96xf32> to vector<2x32xf32>
    %206 = vector.extract_strided_slice %188 {offsets = [0, 64], sizes = [2, 32], strides = [1, 1]} : vector<2x96xf32> to vector<2x32xf32>
    %207 = arith.mulf %196, %206 : vector<2x32xf32>
    %208 = arith.addf %205, %207 : vector<2x32xf32>
    %209 = math.tanh %208 : vector<2x32xf32>
    %cst_48 = arith.constant 1.000000e+00 : f32
    %210 = vector.broadcast %cst_48 : f32 to vector<2x32xf32>
    %211 = arith.subf %210, %204 : vector<2x32xf32>
    %212 = arith.mulf %211, %209 : vector<2x32xf32>
    %213 = arith.mulf %204, %178 : vector<2x32xf32>
    %214 = arith.addf %212, %213 : vector<2x32xf32>
    %215 = arith.index_cast %c5_i32 : i32 to index
    %c0_49 = arith.constant 0 : index
    %c0_50 = arith.constant 0 : index
    %216 = vector.load %arg3[%215, %c0_49, %c0_50] : memref<8x2x32xf32, #tpu.memory_space<vmem>>, vector<1x2x32xf32>
    %217 = vector.shape_cast %216 : vector<1x2x32xf32> to vector<2x32xf32>
    %218 = vector.shape_cast %214 : vector<2x32xf32> to vector<1x2x32xf32>
    tpu.vector_store %arg3[%215, %c0_49, %c0_50], %218 {strides = array<i32>} : memref<8x2x32xf32, #tpu.memory_space<vmem>>, vector<1x2x32xf32>,
    %c6_i32 = arith.constant 6 : i32
    %219 = arith.index_cast %c6_i32 : i32 to index
    %c0_51 = arith.constant 0 : index
    %c0_52 = arith.constant 0 : index
    %220 = vector.load %arg0[%219, %c0_51, %c0_52] : memref<8x2x96xf32, #tpu.memory_space<vmem>>, vector<1x2x96xf32>
    %221 = vector.shape_cast %220 : vector<1x2x96xf32> to vector<2x96xf32>
    %cst_53 = arith.constant dense<0.000000e+00> : vector<2x96xf32>
    %222 = tpu.matmul %214, %0, %cst_53 {dimension_numbers = #tpu.dot_dimension_numbers<[1], [0], [0], [1], [0, 0, 1, 1], [], []>} : vector<2x32xf32>, vector<32x96xf32>, vector<2x96xf32> -> vector<2x96xf32>
    %223 = vector.broadcast %1 : vector<1x96xf32> to vector<2x96xf32>
    %224 = arith.addf %222, %223 : vector<2x96xf32>
    %225 = vector.extract_strided_slice %221 {offsets = [0, 0], sizes = [2, 32], strides = [1, 1]} : vector<2x96xf32> to vector<2x32xf32>
    %226 = vector.extract_strided_slice %224 {offsets = [0, 0], sizes = [2, 32], strides = [1, 1]} : vector<2x96xf32> to vector<2x32xf32>
    %227 = arith.addf %225, %226 : vector<2x32xf32>
    %228 = arith.negf %227 : vector<2x32xf32>
    %229 = math.exp %228 : vector<2x32xf32>
    %cst_54 = arith.constant 1.000000e+00 : f32
    %230 = vector.broadcast %cst_54 : f32 to vector<2x32xf32>
    %231 = arith.addf %230, %229 : vector<2x32xf32>
    %232 = arith.divf %230, %231 : vector<2x32xf32>
    %233 = vector.extract_strided_slice %221 {offsets = [0, 32], sizes = [2, 32], strides = [1, 1]} : vector<2x96xf32> to vector<2x32xf32>
    %234 = vector.extract_strided_slice %224 {offsets = [0, 32], sizes = [2, 32], strides = [1, 1]} : vector<2x96xf32> to vector<2x32xf32>
    %235 = arith.addf %233, %234 : vector<2x32xf32>
    %236 = arith.negf %235 : vector<2x32xf32>
    %237 = math.exp %236 : vector<2x32xf32>
    %cst_55 = arith.constant 1.000000e+00 : f32
    %238 = vector.broadcast %cst_55 : f32 to vector<2x32xf32>
    %239 = arith.addf %238, %237 : vector<2x32xf32>
    %240 = arith.divf %238, %239 : vector<2x32xf32>
    %241 = vector.extract_strided_slice %221 {offsets = [0, 64], sizes = [2, 32], strides = [1, 1]} : vector<2x96xf32> to vector<2x32xf32>
    %242 = vector.extract_strided_slice %224 {offsets = [0, 64], sizes = [2, 32], strides = [1, 1]} : vector<2x96xf32> to vector<2x32xf32>
    %243 = arith.mulf %232, %242 : vector<2x32xf32>
    %244 = arith.addf %241, %243 : vector<2x32xf32>
    %245 = math.tanh %244 : vector<2x32xf32>
    %cst_56 = arith.constant 1.000000e+00 : f32
    %246 = vector.broadcast %cst_56 : f32 to vector<2x32xf32>
    %247 = arith.subf %246, %240 : vector<2x32xf32>
    %248 = arith.mulf %247, %245 : vector<2x32xf32>
    %249 = arith.mulf %240, %214 : vector<2x32xf32>
    %250 = arith.addf %248, %249 : vector<2x32xf32>
    %251 = arith.index_cast %c6_i32 : i32 to index
    %c0_57 = arith.constant 0 : index
    %c0_58 = arith.constant 0 : index
    %252 = vector.load %arg3[%251, %c0_57, %c0_58] : memref<8x2x32xf32, #tpu.memory_space<vmem>>, vector<1x2x32xf32>
    %253 = vector.shape_cast %252 : vector<1x2x32xf32> to vector<2x32xf32>
    %254 = vector.shape_cast %250 : vector<2x32xf32> to vector<1x2x32xf32>
    tpu.vector_store %arg3[%251, %c0_57, %c0_58], %254 {strides = array<i32>} : memref<8x2x32xf32, #tpu.memory_space<vmem>>, vector<1x2x32xf32>,
    %c7_i32 = arith.constant 7 : i32
    %255 = arith.index_cast %c7_i32 : i32 to index
    %c0_59 = arith.constant 0 : index
    %c0_60 = arith.constant 0 : index
    %256 = vector.load %arg0[%255, %c0_59, %c0_60] : memref<8x2x96xf32, #tpu.memory_space<vmem>>, vector<1x2x96xf32>
    %257 = vector.shape_cast %256 : vector<1x2x96xf32> to vector<2x96xf32>
    %cst_61 = arith.constant dense<0.000000e+00> : vector<2x96xf32>
    %258 = tpu.matmul %250, %0, %cst_61 {dimension_numbers = #tpu.dot_dimension_numbers<[1], [0], [0], [1], [0, 0, 1, 1], [], []>} : vector<2x32xf32>, vector<32x96xf32>, vector<2x96xf32> -> vector<2x96xf32>
    %259 = vector.broadcast %1 : vector<1x96xf32> to vector<2x96xf32>
    %260 = arith.addf %258, %259 : vector<2x96xf32>
    %261 = vector.extract_strided_slice %257 {offsets = [0, 0], sizes = [2, 32], strides = [1, 1]} : vector<2x96xf32> to vector<2x32xf32>
    %262 = vector.extract_strided_slice %260 {offsets = [0, 0], sizes = [2, 32], strides = [1, 1]} : vector<2x96xf32> to vector<2x32xf32>
    %263 = arith.addf %261, %262 : vector<2x32xf32>
    %264 = arith.negf %263 : vector<2x32xf32>
    %265 = math.exp %264 : vector<2x32xf32>
    %cst_62 = arith.constant 1.000000e+00 : f32
    %266 = vector.broadcast %cst_62 : f32 to vector<2x32xf32>
    %267 = arith.addf %266, %265 : vector<2x32xf32>
    %268 = arith.divf %266, %267 : vector<2x32xf32>
    %269 = vector.extract_strided_slice %257 {offsets = [0, 32], sizes = [2, 32], strides = [1, 1]} : vector<2x96xf32> to vector<2x32xf32>
    %270 = vector.extract_strided_slice %260 {offsets = [0, 32], sizes = [2, 32], strides = [1, 1]} : vector<2x96xf32> to vector<2x32xf32>
    %271 = arith.addf %269, %270 : vector<2x32xf32>
    %272 = arith.negf %271 : vector<2x32xf32>
    %273 = math.exp %272 : vector<2x32xf32>
    %cst_63 = arith.constant 1.000000e+00 : f32
    %274 = vector.broadcast %cst_63 : f32 to vector<2x32xf32>
    %275 = arith.addf %274, %273 : vector<2x32xf32>
    %276 = arith.divf %274, %275 : vector<2x32xf32>
    %277 = vector.extract_strided_slice %257 {offsets = [0, 64], sizes = [2, 32], strides = [1, 1]} : vector<2x96xf32> to vector<2x32xf32>
    %278 = vector.extract_strided_slice %260 {offsets = [0, 64], sizes = [2, 32], strides = [1, 1]} : vector<2x96xf32> to vector<2x32xf32>
    %279 = arith.mulf %268, %278 : vector<2x32xf32>
    %280 = arith.addf %277, %279 : vector<2x32xf32>
    %281 = math.tanh %280 : vector<2x32xf32>
    %cst_64 = arith.constant 1.000000e+00 : f32
    %282 = vector.broadcast %cst_64 : f32 to vector<2x32xf32>
    %283 = arith.subf %282, %276 : vector<2x32xf32>
    %284 = arith.mulf %283, %281 : vector<2x32xf32>
    %285 = arith.mulf %276, %250 : vector<2x32xf32>
    %286 = arith.addf %284, %285 : vector<2x32xf32>
    %287 = arith.index_cast %c7_i32 : i32 to index
    %c0_65 = arith.constant 0 : index
    %c0_66 = arith.constant 0 : index
    %288 = vector.load %arg3[%287, %c0_65, %c0_66] : memref<8x2x32xf32, #tpu.memory_space<vmem>>, vector<1x2x32xf32>
    %289 = vector.shape_cast %288 : vector<1x2x32xf32> to vector<2x32xf32>
    %290 = vector.shape_cast %286 : vector<2x32xf32> to vector<1x2x32xf32>
    tpu.vector_store %arg3[%287, %c0_65, %c0_66], %290 {strides = array<i32>} : memref<8x2x32xf32, #tpu.memory_space<vmem>>, vector<1x2x32xf32>,
    %c8_i32 = arith.constant 8 : i32
    %c0_67 = arith.constant 0 : index
    %c0_68 = arith.constant 0 : index
    %291 = vector.load %arg4[%c0_67, %c0_68] : memref<2x32xf32, #tpu.memory_space<vmem>>, vector<2x32xf32>
    tpu.vector_store %arg4[%c0_67, %c0_68], %286 {strides = array<i32>} : memref<2x32xf32, #tpu.memory_space<vmem>>, vector<2x32xf32>,
    return
  }
}

</mosaic_0001>

<llo_original>
// kernel: tpu_custom_call.1
$region0: #{tpu_custom_call.1}
  #allocation0 [shape = 'u32[]', space=smem, size = 0x4, offset = 0x4, fixed_abs, tag = 'smem constant byte address 0x4 - core index']
  #allocation1 [shape = 'u32[144,128]{1,0:T(1,128)}', space=vmem, size = 0x12000, scoped, tag = 'internal scratch']
  %s0 = inlined_call_operand.hbm [shape: f32[8,2,96], index: 0, kind: input, shape index: {}]
  %s1 = inlined_call_operand.hbm [shape: f32[32,96], index: 1, kind: input, shape index: {}]
  %s2 = inlined_call_operand.vmem [shape: f32[1,96], index: 2, kind: input, shape index: {}]
  %s3 = inlined_call_operand.hbm [shape: f32[8,2,32], index: 3, kind: output, shape index: {0}]
  %s4 = inlined_call_operand.hbm [shape: f32[2,32], index: 4, kind: output, shape index: {1}]
  %5 = xla_tuple %s3, %s4
  %s6 = sld [smem:[#allocation0]]
  $region38: #{tpu_custom_call.1} parent=0
    _
  %s8 = ssub.s32 1, %s6
  %s9 = scalar_select 0, %s8, %s6
  $region1: #{tpu_custom_call.1} parent=0
    #allocation2 [shape = 'u8[8192]{0}', space=vmem, size = 0x2000, scoped, tag = 'input window, operand 0, single buffered']
    #allocation3 [shape = 's32[1]{0}', space=sflag, size = 0x4, scoped, tag = 'scoped memory for tpu_custom_call.1']
    #allocation4 [shape = 's32[1]{0}', space=sflag, size = 0x4, scoped, tag = 'scoped memory for tpu_custom_call.1']
    #allocation5 [shape = 'u8[16384]{0}', space=vmem, size = 0x4000, scoped, tag = 'input window, operand 1, single buffered']
    #allocation6 [shape = 's32[1]{0}', space=sflag, size = 0x4, scoped, tag = 'scoped memory for tpu_custom_call.1']
    #allocation7 [shape = 'u8[8192]{0}', space=vmem, size = 0x2000, scoped, tag = 'output window, operand 0, single buffered']
    #allocation8 [shape = 'u8[1024]{0}', space=vmem, size = 0x400, scoped, tag = 'output window, operand 1, single buffered']
    #allocation9 [shape = 's32[1]{0}', space=sflag, size = 0x4, scoped, tag = 'scoped memory for tpu_custom_call.1']
    %10 = vsyncpa [#allocation3], 0
    %11 = vsyncpa [#allocation6], 0
    %12 = vsyncpa [#allocation4], 0
    %13 = vsyncpa [#allocation9], 0
    // Predicated region
    $region2: #{tpu_custom_call.1} parent=1 // pred_check
      _
    $region3: #{tpu_custom_call.1} parent=1 // pred_check_branch
      %15 = sbr.rel (0) target = $region5
    $region4: #{tpu_custom_call.1} parent=1 // pred_region
      %s17 = ssub.s32 256, 256
      %18 = vsyncadd [#allocation3], %s17
      %s19 = sshll.u32 [#allocation2], 4
      %s20 = int_to_ptr.vmem [resolvable:$true] %s19
      %25 = dma.hbm_to_vmem [thread:$0]  %s0, 256, %s20, [#allocation3], 32, 32, 2
    $region5: #{tpu_custom_call.1} parent=1 // pred_fallthru
      _
    // Predicated region
    $region6: #{tpu_custom_call.1} parent=1 // pred_check
      _
    $region7: #{tpu_custom_call.1} parent=1 // pred_check_branch
      %27 = sbr.rel (0) target = $region9
    $region8: #{tpu_custom_call.1} parent=1 // pred_region
      %s29 = ssub.s32 512, 512
      %30 = vsyncadd [#allocation6], %s29
      %s31 = sshll.u32 [#allocation5], 4
      %s32 = int_to_ptr.vmem [resolvable:$true] %s31
      %37 = dma.hbm_to_vmem [thread:$0]  %s1, 512, %s32, [#allocation6], 128, 128, 8
    $region9: #{tpu_custom_call.1} parent=1 // pred_fallthru
      _
    // Predicated region
    $region10: #{tpu_custom_call.1} parent=1 // pred_check
      _
    $region11: #{tpu_custom_call.1} parent=1 // pred_check_branch
      %39 = sbr.rel (0) target = $region13
    $region12: #{tpu_custom_call.1} parent=1 // pred_region
      _
    $region13: #{tpu_custom_call.1} parent=1 // pred_fallthru
      _
    // Predicated region
    $region14: #{tpu_custom_call.1} parent=1 // pred_check
      _
    $region15: #{tpu_custom_call.1} parent=1 // pred_check_branch
      %41 = sbr.rel (0) target = $region17
    $region16: #{tpu_custom_call.1} parent=1 // pred_region
      %42 = dma.done [#allocation3], 256
    $region17: #{tpu_custom_call.1} parent=1 // pred_fallthru
      _
    // Predicated region
    $region18: #{tpu_custom_call.1} parent=1 // pred_check
      _
    $region19: #{tpu_custom_call.1} parent=1 // pred_check_branch
      %44 = sbr.rel (0) target = $region21
    $region20: #{tpu_custom_call.1} parent=1 // pred_region
      %45 = dma.done [#allocation6], 512
    $region21: #{tpu_custom_call.1} parent=1 // pred_fallthru
      _
    %v46 = vld [vmem:[#allocation5] sm:$0xff]
    %v47 = vld [vmem:[#allocation5 + $0x8] sm:$0xff]
    %v48 = vld [vmem:[#allocation5 + $0x10] sm:$0xff]
    %v49 = vld [vmem:[#allocation5 + $0x18] sm:$0xff]
    %v50 = vld [vmem:[%s2] sm:$0x1]
    %v51 = vld [vmem:[#allocation2] sm:$0x3]
    %v53 = vlaneseq
    %v54 = vshrl.u32 %v53, 7
    %v55 = vsub.s32 0, %v54
    %v56 = vrot.slane %v50, %v55
    %vm58 = vcmask 261120
    %v60 = vsel %vm58, 0.0, 0
    %62 = vmatprep.subr.mxu0 0.0
    %63 = vmatpush1.msra.mxu0 0.0
    %64 = vmatprep.subr.mxu0 0.0
    %65 = vmatpush1.msra.mxu0 0.0
    %66 = vmatprep.subr.mxu0 0.0
    %67 = vmatpush1.msra.mxu0 0.0
    %68 = vmatprep.subr.mxu0 0.0
    %69 = vmatpush1.msra.mxu0 0.0
    %70 = vmatprep.subr.mxu0 0.0
    %71 = vmatpush1.msra.mxu0 0.0
    %72 = vmatprep.subr.mxu0 0.0
    %73 = vmatpush1.msra.mxu0 0.0
    %74 = vmatprep.subr.mxu0 0.0
    %75 = vmatpush1.msra.mxu0 0.0
    %76 = vmatprep.subr.mxu0 0.0
    %77 = vmatpush1.msra.mxu0 0.0
    %78 = vmatprep.subr.mxu0 0.0
    %79 = vmatpush1.msra.mxu0 0.0
    %80 = vmatprep.subr.mxu0 0.0
    %81 = vmatpush1.msra.mxu0 0.0
    %82 = vmatprep.subr.mxu0 0.0
    %83 = vmatpush1.msra.mxu0 0.0
    %84 = vmatprep.subr.mxu0 0.0
    %85 = vmatpush1.msra.mxu0 0.0
    %86 = vmatprep.subr.mxu0 0.0
    %87 = vmatpush1.msra.mxu0 %v49
    %88 = vmatprep.subr.mxu0 0.0
    %89 = vmatpush1.msra.mxu0 %v48
    %90 = vmatprep.subr.mxu0 0.0
    %91 = vmatpush1.msra.mxu0 %v47
    %92 = vmatprep.subr.mxu0 0.0
    %93 = vmatpush1.msra.mxu0 %v46
    %94 = vmatprep.subr.mxu0 0.0
    %95 = vmatpush2.msra.mxu0 0.0
    %96 = vmatprep.subr.mxu0 0.0
    %97 = vmatpush2.msra.mxu0 0.0
    %98 = vmatprep.subr.mxu0 0.0
    %99 = vmatpush2.msra.mxu0 0.0
    %100 = vmatprep.subr.mxu0 0.0
    %101 = vmatpush2.msra.mxu0 0.0
    %102 = vmatprep.subr.mxu0 0.0
    %103 = vmatpush2.msra.mxu0 0.0
    %104 = vmatprep.subr.mxu0 0.0
    %105 = vmatpush2.msra.mxu0 0.0
    %106 = vmatprep.subr.mxu0 0.0
    %107 = vmatpush2.msra.mxu0 0.0
    %108 = vmatprep.subr.mxu0 0.0
    %109 = vmatpush2.msra.mxu0 0.0
    %110 = vmatprep.subr.mxu0 0.0
    %111 = vmatpush2.msra.mxu0 0.0
    %112 = vmatprep.subr.mxu0 0.0
    %113 = vmatpush2.msra.mxu0 0.0
    %114 = vmatprep.subr.mxu0 0.0
    %115 = vmatpush2.msra.mxu0 0.0
    %116 = vmatprep.subr.mxu0 0.0
    %117 = vmatpush2.msra.mxu0 0.0
    %118 = vmatprep.subr.mxu0 0.0
    %119 = vmatpush2.msra.mxu0 0.0
    %120 = vmatprep.subr.mxu0 0.0
    %121 = vmatpush2.msra.mxu0 0.0
    %122 = vmatprep.subr.mxu0 0.0
    %123 = vmatpush2.msra.mxu0 0.0
    %124 = vmatprep.subr.mxu0 0.0
    %125 = vmatpush2.msra.mxu0 0.0
    %126 = vmatprep.mubr.f32.mxu0 0.0
    %127 = vmatmul.mubr.f32.gmra.mxu0 %v60
    %v128 = vpop.f32.mrf.mxu0
    %v129 = vadd.f32 %v56, %v128
    %v130 = vpop.f32.mrf.mxu0
    %131 = vdwg.mxu0
    %v132 = vadd.f32 %v51, %v129
    %v133 = vxor.u32 %v132, 2147483648
    %v134 = vmul.f32 %v133, 1.442695
    %v135 = vpow.pop %v134
    %v136 = vadd.f32 %v135, 1.0
    %v137 = vrcp.pop %v136
    %v138 = vmul.f32 1.0, %v137
    %140 = vrot.lane.b32.xlu0 %v129, 64
    %v141 = vpop.permute.xlu0 %140
    %v143 = vmul.f32 %v138, %v141
    %145 = vrot.lane.b32.xlu0 %v143, 64
    %v146 = vpop.permute.xlu0 %145
    %v148 = vadd.f32 %v51, %v146
    %v149 = vtanh.pop %v148
    %v150 = vsub.f32 1.0, %v138
    %152 = vrot.lane.b32.xlu0 %v149, 96
    %v153 = vpop.permute.xlu0 %152
    %v155 = vmul.f32 %v150, %v153
    %v156 = vmul.f32 %v138, 0.0
    %v157 = vadd.f32 %v155, %v156
    %159 = vrot.lane.b32.xlu0 %v157, 96
    %v160 = vpop.permute.xlu0 %159
    %vm162 = vcmask 254976
    %163 = vst.msk [vmem:[#allocation7] sm:$0x3] %vm162, %v160
    %s164 = scalar_lea.vmem [#allocation2], 2
    %v165 = vld [vmem:[%s164] sm:$0x3]
    %v166 = vsel %vm58, %v160, 0
    %168 = vmatprep.subr.mxu0 0.0
    %169 = vmatpush1.msra.mxu0 0.0
    %170 = vmatprep.subr.mxu0 0.0
    %171 = vmatpush1.msra.mxu0 0.0
    %172 = vmatprep.subr.mxu0 0.0
    %173 = vmatpush1.msra.mxu0 0.0
    %174 = vmatprep.subr.mxu0 0.0
    %175 = vmatpush1.msra.mxu0 0.0
    %176 = vmatprep.subr.mxu0 0.0
    %177 = vmatpush1.msra.mxu0 0.0
    %178 = vmatprep.subr.mxu0 0.0
    %179 = vmatpush1.msra.mxu0 0.0
    %180 = vmatprep.subr.mxu0 0.0
    %181 = vmatpush1.msra.mxu0 0.0
    %182 = vmatprep.subr.mxu0 0.0
    %183 = vmatpush1.msra.mxu0 0.0
    %184 = vmatprep.subr.mxu0 0.0
    %185 = vmatpush1.msra.mxu0 0.0
    %186 = vmatprep.subr.mxu0 0.0
    %187 = vmatpush1.msra.mxu0 0.0
    %188 = vmatprep.subr.mxu0 0.0
    %189 = vmatpush1.msra.mxu0 0.0
    %190 = vmatprep.subr.mxu0 0.0
    %191 = vmatpush1.msra.mxu0 0.0
    %192 = vmatprep.subr.mxu0 0.0
    %193 = vmatpush1.msra.mxu0 %v49
    %194 = vmatprep.subr.mxu0 0.0
    %195 = vmatpush1.msra.mxu0 %v48
    %196 = vmatprep.subr.mxu0 0.0
    %197 = vmatpush1.msra.mxu0 %v47
    %198 = vmatprep.subr.mxu0 0.0
    %199 = vmatpush1.msra.mxu0 %v46
    %200 = vmatprep.subr.mxu0 0.0
    %201 = vmatpush2.msra.mxu0 0.0
    %202 = vmatprep.subr.mxu0 0.0
    %203 = vmatpush2.msra.mxu0 0.0
    %204 = vmatprep.subr.mxu0 0.0
    %205 = vmatpush2.msra.mxu0 0.0
    %206 = vmatprep.subr.mxu0 0.0
    %207 = vmatpush2.msra.mxu0 0.0
    %208 = vmatprep.subr.mxu0 0.0
    %209 = vmatpush2.msra.mxu0 0.0
    %210 = vmatprep.subr.mxu0 0.0
    %211 = vmatpush2.msra.mxu0 0.0
    %212 = vmatprep.subr.mxu0 0.0
    %213 = vmatpush2.msra.mxu0 0.0
    %214 = vmatprep.subr.mxu0 0.0
    %215 = vmatpush2.msra.mxu0 0.0
    %216 = vmatprep.subr.mxu0 0.0
    %217 = vmatpush2.msra.mxu0 0.0
    %218 = vmatprep.subr.mxu0 0.0
    %219 = vmatpush2.msra.mxu0 0.0
    %220 = vmatprep.subr.mxu0 0.0
    %221 = vmatpush2.msra.mxu0 0.0
    %222 = vmatprep.subr.mxu0 0.0
    %223 = vmatpush2.msra.mxu0 0.0
    %224 = vmatprep.subr.mxu0 0.0
    %225 = vmatpush2.msra.mxu0 0.0
    %226 = vmatprep.subr.mxu0 0.0
    %227 = vmatpush2.msra.mxu0 0.0
    %228 = vmatprep.subr.mxu0 0.0
    %229 = vmatpush2.msra.mxu0 0.0
    %230 = vmatprep.subr.mxu0 0.0
    %231 = vmatpush2.msra.mxu0 0.0
    %232 = vmatprep.mubr.f32.mxu0 0.0
    %233 = vmatmul.mubr.f32.gmra.mxu0 %v166
    %v234 = vpop.f32.mrf.mxu0
    %v235 = vadd.f32 %v56, %v234
    %v236 = vpop.f32.mrf.mxu0
    %237 = vdwg.mxu0
    %v238 = vadd.f32 %v165, %v235
    %v239 = vxor.u32 %v238, 2147483648
    %v240 = vmul.f32 %v239, 1.442695
    %v241 = vpow.pop %v240
    %v242 = vadd.f32 %v241, 1.0
    %v243 = vrcp.pop %v242
    %v244 = vmul.f32 1.0, %v243
    %246 = vrot.lane.b32.xlu0 %v235, 64
    %v247 = vpop.permute.xlu0 %246
    %v249 = vmul.f32 %v244, %v247
    %251 = vrot.lane.b32.xlu0 %v249, 64
    %v252 = vpop.permute.xlu0 %251
    %v254 = vadd.f32 %v165, %v252
    %v255 = vtanh.pop %v254
    %v256 = vsub.f32 1.0, %v244
    %258 = vrot.lane.b32.xlu0 %v255, 96
    %v259 = vpop.permute.xlu0 %258
    %v261 = vmul.f32 %v256, %v259
    %v262 = vmul.f32 %v244, %v157
    %v263 = vadd.f32 %v261, %v262
    %265 = vrot.lane.b32.xlu0 %v263, 96
    %v266 = vpop.permute.xlu0 %265
    %s268 = scalar_lea.vmem [#allocation7], 2
    %269 = vst.msk [vmem:[%s268] sm:$0x3] %vm162, %v266
    %s270 = scalar_lea.vmem [#allocation2], 4
    %v271 = vld [vmem:[%s270] sm:$0x3]
    %v272 = vsel %vm58, %v266, 0
    %274 = vmatprep.subr.mxu0 0.0
    %275 = vmatpush1.msra.mxu0 0.0
    %276 = vmatprep.subr.mxu0 0.0
    %277 = vmatpush1.msra.mxu0 0.0
    %278 = vmatprep.subr.mxu0 0.0
    %279 = vmatpush1.msra.mxu0 0.0
    %280 = vmatprep.subr.mxu0 0.0
    %281 = vmatpush1.msra.mxu0 0.0
    %282 = vmatprep.subr.mxu0 0.0
    %283 = vmatpush1.msra.mxu0 0.0
    %284 = vmatprep.subr.mxu0 0.0
    %285 = vmatpush1.msra.mxu0 0.0
    %286 = vmatprep.subr.mxu0 0.0
    %287 = vmatpush1.msra.mxu0 0.0
    %288 = vmatprep.subr.mxu0 0.0
    %289 = vmatpush1.msra.mxu0 0.0
    %290 = vmatprep.subr.mxu0 0.0
    %291 = vmatpush1.msra.mxu0 0.0
    %292 = vmatprep.subr.mxu0 0.0
    %293 = vmatpush1.msra.mxu0 0.0
    %294 = vmatprep.subr.mxu0 0.0
    %295 = vmatpush1.msra.mxu0 0.0
    %296 = vmatprep.subr.mxu0 0.0
    %297 = vmatpush1.msra.mxu0 0.0
    %298 = vmatprep.subr.mxu0 0.0
    %299 = vmatpush1.msra.mxu0 %v49
    %300 = vmatprep.subr.mxu0 0.0
    %301 = vmatpush1.msra.mxu0 %v48
    %302 = vmatprep.subr.mxu0 0.0
    %303 = vmatpush1.msra.mxu0 %v47
    %304 = vmatprep.subr.mxu0 0.0
    %305 = vmatpush1.msra.mxu0 %v46
    %306 = vmatprep.subr.mxu0 0.0
    %307 = vmatpush2.msra.mxu0 0.0
    %308 = vmatprep.subr.mxu0 0.0
    %309 = vmatpush2.msra.mxu0 0.0
    %310 = vmatprep.subr.mxu0 0.0
    %311 = vmatpush2.msra.mxu0 0.0
    %312 = vmatprep.subr.mxu0 0.0
    %313 = vmatpush2.msra.mxu0 0.0
    %314 = vmatprep.subr.mxu0 0.0
    %315 = vmatpush2.msra.mxu0 0.0
    %316 = vmatprep.subr.mxu0 0.0
    %317 = vmatpush2.msra.mxu0 0.0
    %318 = vmatprep.subr.mxu0 0.0
    %319 = vmatpush2.msra.mxu0 0.0
    %320 = vmatprep.subr.mxu0 0.0
    %321 = vmatpush2.msra.mxu0 0.0
    %322 = vmatprep.subr.mxu0 0.0
    %323 = vmatpush2.msra.mxu0 0.0
    %324 = vmatprep.subr.mxu0 0.0
    %325 = vmatpush2.msra.mxu0 0.0
    %326 = vmatprep.subr.mxu0 0.0
    %327 = vmatpush2.msra.mxu0 0.0
    %328 = vmatprep.subr.mxu0 0.0
    %329 = vmatpush2.msra.mxu0 0.0
    %330 = vmatprep.subr.mxu0 0.0
    %331 = vmatpush2.msra.mxu0 0.0
    %332 = vmatprep.subr.mxu0 0.0
    %333 = vmatpush2.msra.mxu0 0.0
    %334 = vmatprep.subr.mxu0 0.0
    %335 = vmatpush2.msra.mxu0 0.0
    %336 = vmatprep.subr.mxu0 0.0
    %337 = vmatpush2.msra.mxu0 0.0
    %338 = vmatprep.mubr.f32.mxu0 0.0
    %339 = vmatmul.mubr.f32.gmra.mxu0 %v272
    %v340 = vpop.f32.mrf.mxu0
    %v341 = vadd.f32 %v56, %v340
    %v342 = vpop.f32.mrf.mxu0
    %343 = vdwg.mxu0
    %v344 = vadd.f32 %v271, %v341
    %v345 = vxor.u32 %v344, 2147483648
    %v346 = vmul.f32 %v345, 1.442695
    %v347 = vpow.pop %v346
    %v348 = vadd.f32 %v347, 1.0
    %v349 = vrcp.pop %v348
    %v350 = vmul.f32 1.0, %v349
    %352 = vrot.lane.b32.xlu0 %v341, 64
    %v353 = vpop.permute.xlu0 %352
    %v355 = vmul.f32 %v350, %v353
    %357 = vrot.lane.b32.xlu0 %v355, 64
    %v358 = vpop.permute.xlu0 %357
    %v360 = vadd.f32 %v271, %v358
    %v361 = vtanh.pop %v360
    %v362 = vsub.f32 1.0, %v350
    %364 = vrot.lane.b32.xlu0 %v361, 96
    %v365 = vpop.permute.xlu0 %364
    %v367 = vmul.f32 %v362, %v365
    %v368 = vmul.f32 %v350, %v263
    %v369 = vadd.f32 %v367, %v368
    %371 = vrot.lane.b32.xlu0 %v369, 96
    %v372 = vpop.permute.xlu0 %371
    %s374 = scalar_lea.vmem [#allocation7], 4
    %375 = vst.msk [vmem:[%s374] sm:$0x3] %vm162, %v372
    %s376 = scalar_lea.vmem [#allocation2], 6
    %v377 = vld [vmem:[%s376] sm:$0x3]
    %v378 = vsel %vm58, %v372, 0
    %380 = vmatprep.subr.mxu0 0.0
    %381 = vmatpush1.msra.mxu0 0.0
    %382 = vmatprep.subr.mxu0 0.0
    %383 = vmatpush1.msra.mxu0 0.0
    %384 = vmatprep.subr.mxu0 0.0
    %385 = vmatpush1.msra.mxu0 0.0
    %386 = vmatprep.subr.mxu0 0.0
    %387 = vmatpush1.msra.mxu0 0.0
    %388 = vmatprep.subr.mxu0 0.0
    %389 = vmatpush1.msra.mxu0 0.0
    %390 = vmatprep.subr.mxu0 0.0
    %391 = vmatpush1.msra.mxu0 0.0
    %392 = vmatprep.subr.mxu0 0.0
    %393 = vmatpush1.msra.mxu0 0.0
    %394 = vmatprep.subr.mxu0 0.0
    %395 = vmatpush1.msra.mxu0 0.0
    %396 = vmatprep.subr.mxu0 0.0
    %397 = vmatpush1.msra.mxu0 0.0
    %398 = vmatprep.subr.mxu0 0.0
    %399 = vmatpush1.msra.mxu0 0.0
    %400 = vmatprep.subr.mxu0 0.0
    %401 = vmatpush1.msra.mxu0 0.0
    %402 = vmatprep.subr.mxu0 0.0
    %403 = vmatpush1.msra.mxu0 0.0
    %404 = vmatprep.subr.mxu0 0.0
    %405 = vmatpush1.msra.mxu0 %v49
    %406 = vmatprep.subr.mxu0 0.0
    %407 = vmatpush1.msra.mxu0 %v48
    %408 = vmatprep.subr.mxu0 0.0
    %409 = vmatpush1.msra.mxu0 %v47
    %410 = vmatprep.subr.mxu0 0.0
    %411 = vmatpush1.msra.mxu0 %v46
    %412 = vmatprep.subr.mxu0 0.0
    %413 = vmatpush2.msra.mxu0 0.0
    %414 = vmatprep.subr.mxu0 0.0
    %415 = vmatpush2.msra.mxu0 0.0
    %416 = vmatprep.subr.mxu0 0.0
    %417 = vmatpush2.msra.mxu0 0.0
    %418 = vmatprep.subr.mxu0 0.0
    %419 = vmatpush2.msra.mxu0 0.0
    %420 = vmatprep.subr.mxu0 0.0
    %421 = vmatpush2.msra.mxu0 0.0
    %422 = vmatprep.subr.mxu0 0.0
    %423 = vmatpush2.msra.mxu0 0.0
    %424 = vmatprep.subr.mxu0 0.0
    %425 = vmatpush2.msra.mxu0 0.0
    %426 = vmatprep.subr.mxu0 0.0
    %427 = vmatpush2.msra.mxu0 0.0
    %428 = vmatprep.subr.mxu0 0.0
    %429 = vmatpush2.msra.mxu0 0.0
    %430 = vmatprep.subr.mxu0 0.0
    %431 = vmatpush2.msra.mxu0 0.0
    %432 = vmatprep.subr.mxu0 0.0
    %433 = vmatpush2.msra.mxu0 0.0
    %434 = vmatprep.subr.mxu0 0.0
    %435 = vmatpush2.msra.mxu0 0.0
    %436 = vmatprep.subr.mxu0 0.0
    %437 = vmatpush2.msra.mxu0 0.0
    %438 = vmatprep.subr.mxu0 0.0
    %439 = vmatpush2.msra.mxu0 0.0
    %440 = vmatprep.subr.mxu0 0.0
    %441 = vmatpush2.msra.mxu0 0.0
    %442 = vmatprep.subr.mxu0 0.0
    %443 = vmatpush2.msra.mxu0 0.0
    %444 = vmatprep.mubr.f32.mxu0 0.0
    %445 = vmatmul.mubr.f32.gmra.mxu0 %v378
    %v446 = vpop.f32.mrf.mxu0
    %v447 = vadd.f32 %v56, %v446
    %v448 = vpop.f32.mrf.mxu0
    %449 = vdwg.mxu0
    %v450 = vadd.f32 %v377, %v447
    %v451 = vxor.u32 %v450, 2147483648
    %v452 = vmul.f32 %v451, 1.442695
    %v453 = vpow.pop %v452
    %v454 = vadd.f32 %v453, 1.0
    %v455 = vrcp.pop %v454
    %v456 = vmul.f32 1.0, %v455
    %458 = vrot.lane.b32.xlu0 %v447, 64
    %v459 = vpop.permute.xlu0 %458
    %v461 = vmul.f32 %v456, %v459
    %463 = vrot.lane.b32.xlu0 %v461, 64
    %v464 = vpop.permute.xlu0 %463
    %v466 = vadd.f32 %v377, %v464
    %v467 = vtanh.pop %v466
    %v468 = vsub.f32 1.0, %v456
    %470 = vrot.lane.b32.xlu0 %v467, 96
    %v471 = vpop.permute.xlu0 %470
    %v473 = vmul.f32 %v468, %v471
    %v474 = vmul.f32 %v456, %v369
    %v475 = vadd.f32 %v473, %v474
    %477 = vrot.lane.b32.xlu0 %v475, 96
    %v478 = vpop.permute.xlu0 %477
    %s480 = scalar_lea.vmem [#allocation7], 6
    %481 = vst.msk [vmem:[%s480] sm:$0x3] %vm162, %v478
    %s482 = scalar_lea.vmem [#allocation2], 8
    %v483 = vld [vmem:[%s482] sm:$0x3]
    %v484 = vsel %vm58, %v478, 0
    %486 = vmatprep.subr.mxu0 0.0
    %487 = vmatpush1.msra.mxu0 0.0
    %488 = vmatprep.subr.mxu0 0.0
    %489 = vmatpush1.msra.mxu0 0.0
    %490 = vmatprep.subr.mxu0 0.0
    %491 = vmatpush1.msra.mxu0 0.0
    %492 = vmatprep.subr.mxu0 0.0
    %493 = vmatpush1.msra.mxu0 0.0
    %494 = vmatprep.subr.mxu0 0.0
    %495 = vmatpush1.msra.mxu0 0.0
    %496 = vmatprep.subr.mxu0 0.0
    %497 = vmatpush1.msra.mxu0 0.0
    %498 = vmatprep.subr.mxu0 0.0
    %499 = vmatpush1.msra.mxu0 0.0
    %500 = vmatprep.subr.mxu0 0.0
    %501 = vmatpush1.msra.mxu0 0.0
    %502 = vmatprep.subr.mxu0 0.0
    %503 = vmatpush1.msra.mxu0 0.0
    %504 = vmatprep.subr.mxu0 0.0
    %505 = vmatpush1.msra.mxu0 0.0
    %506 = vmatprep.subr.mxu0 0.0
    %507 = vmatpush1.msra.mxu0 0.0
    %508 = vmatprep.subr.mxu0 0.0
    %509 = vmatpush1.msra.mxu0 0.0
    %510 = vmatprep.subr.mxu0 0.0
    %511 = vmatpush1.msra.mxu0 %v49
    %512 = vmatprep.subr.mxu0 0.0
    %513 = vmatpush1.msra.mxu0 %v48
    %514 = vmatprep.subr.mxu0 0.0
    %515 = vmatpush1.msra.mxu0 %v47
    %516 = vmatprep.subr.mxu0 0.0
    %517 = vmatpush1.msra.mxu0 %v46
    %518 = vmatprep.subr.mxu0 0.0
    %519 = vmatpush2.msra.mxu0 0.0
    %520 = vmatprep.subr.mxu0 0.0
    %521 = vmatpush2.msra.mxu0 0.0
    %522 = vmatprep.subr.mxu0 0.0
    %523 = vmatpush2.msra.mxu0 0.0
    %524 = vmatprep.subr.mxu0 0.0
    %525 = vmatpush2.msra.mxu0 0.0
    %526 = vmatprep.subr.mxu0 0.0
    %527 = vmatpush2.msra.mxu0 0.0
    %528 = vmatprep.subr.mxu0 0.0
    %529 = vmatpush2.msra.mxu0 0.0
    %530 = vmatprep.subr.mxu0 0.0
    %531 = vmatpush2.msra.mxu0 0.0
    %532 = vmatprep.subr.mxu0 0.0
    %533 = vmatpush2.msra.mxu0 0.0
    %534 = vmatprep.subr.mxu0 0.0
    %535 = vmatpush2.msra.mxu0 0.0
    %536 = vmatprep.subr.mxu0 0.0
    %537 = vmatpush2.msra.mxu0 0.0
    %538 = vmatprep.subr.mxu0 0.0
    %539 = vmatpush2.msra.mxu0 0.0
    %540 = vmatprep.subr.mxu0 0.0
    %541 = vmatpush2.msra.mxu0 0.0
    %542 = vmatprep.subr.mxu0 0.0
    %543 = vmatpush2.msra.mxu0 0.0
    %544 = vmatprep.subr.mxu0 0.0
    %545 = vmatpush2.msra.mxu0 0.0
    %546 = vmatprep.subr.mxu0 0.0
    %547 = vmatpush2.msra.mxu0 0.0
    %548 = vmatprep.subr.mxu0 0.0
    %549 = vmatpush2.msra.mxu0 0.0
    %550 = vmatprep.mubr.f32.mxu0 0.0
    %551 = vmatmul.mubr.f32.gmra.mxu0 %v484
    %v552 = vpop.f32.mrf.mxu0
    %v553 = vadd.f32 %v56, %v552
    %v554 = vpop.f32.mrf.mxu0
    %555 = vdwg.mxu0
    %v556 = vadd.f32 %v483, %v553
    %v557 = vxor.u32 %v556, 2147483648
    %v558 = vmul.f32 %v557, 1.442695
    %v559 = vpow.pop %v558
    %v560 = vadd.f32 %v559, 1.0
    %v561 = vrcp.pop %v560
    %v562 = vmul.f32 1.0, %v561
    %564 = vrot.lane.b32.xlu0 %v553, 64
    %v565 = vpop.permute.xlu0 %564
    %v567 = vmul.f32 %v562, %v565
    %569 = vrot.lane.b32.xlu0 %v567, 64
    %v570 = vpop.permute.xlu0 %569
    %v572 = vadd.f32 %v483, %v570
    %v573 = vtanh.pop %v572
    %v574 = vsub.f32 1.0, %v562
    %576 = vrot.lane.b32.xlu0 %v573, 96
    %v577 = vpop.permute.xlu0 %576
    %v579 = vmul.f32 %v574, %v577
    %v580 = vmul.f32 %v562, %v475
    %v581 = vadd.f32 %v579, %v580
    %583 = vrot.lane.b32.xlu0 %v581, 96
    %v584 = vpop.permute.xlu0 %583
    %s586 = scalar_lea.vmem [#allocation7], 8
    %587 = vst.msk [vmem:[%s586] sm:$0x3] %vm162, %v584
    %s588 = scalar_lea.vmem [#allocation2], 10
    %v589 = vld [vmem:[%s588] sm:$0x3]
    %v590 = vsel %vm58, %v584, 0
    %592 = vmatprep.subr.mxu0 0.0
    %593 = vmatpush1.msra.mxu0 0.0
    %594 = vmatprep.subr.mxu0 0.0
    %595 = vmatpush1.msra.mxu0 0.0
    %596 = vmatprep.subr.mxu0 0.0
    %597 = vmatpush1.msra.mxu0 0.0
    %598 = vmatprep.subr.mxu0 0.0
    %599 = vmatpush1.msra.mxu0 0.0
    %600 = vmatprep.subr.mxu0 0.0
    %601 = vmatpush1.msra.mxu0 0.0
    %602 = vmatprep.subr.mxu0 0.0
    %603 = vmatpush1.msra.mxu0 0.0
    %604 = vmatprep.subr.mxu0 0.0
    %605 = vmatpush1.msra.mxu0 0.0
    %606 = vmatprep.subr.mxu0 0.0
    %607 = vmatpush1.msra.mxu0 0.0
    %608 = vmatprep.subr.mxu0 0.0
    %609 = vmatpush1.msra.mxu0 0.0
    %610 = vmatprep.subr.mxu0 0.0
    %611 = vmatpush1.msra.mxu0 0.0
    %612 = vmatprep.subr.mxu0 0.0
    %613 = vmatpush1.msra.mxu0 0.0
    %614 = vmatprep.subr.mxu0 0.0
    %615 = vmatpush1.msra.mxu0 0.0
    %616 = vmatprep.subr.mxu0 0.0
    %617 = vmatpush1.msra.mxu0 %v49
    %618 = vmatprep.subr.mxu0 0.0
    %619 = vmatpush1.msra.mxu0 %v48
    %620 = vmatprep.subr.mxu0 0.0
    %621 = vmatpush1.msra.mxu0 %v47
    %622 = vmatprep.subr.mxu0 0.0
    %623 = vmatpush1.msra.mxu0 %v46
    %624 = vmatprep.subr.mxu0 0.0
    %625 = vmatpush2.msra.mxu0 0.0
    %626 = vmatprep.subr.mxu0 0.0
    %627 = vmatpush2.msra.mxu0 0.0
    %628 = vmatprep.subr.mxu0 0.0
    %629 = vmatpush2.msra.mxu0 0.0
    %630 = vmatprep.subr.mxu0 0.0
    %631 = vmatpush2.msra.mxu0 0.0
    %632 = vmatprep.subr.mxu0 0.0
    %633 = vmatpush2.msra.mxu0 0.0
    %634 = vmatprep.subr.mxu0 0.0
    %635 = vmatpush2.msra.mxu0 0.0
    %636 = vmatprep.subr.mxu0 0.0
    %637 = vmatpush2.msra.mxu0 0.0
    %638 = vmatprep.subr.mxu0 0.0
    %639 = vmatpush2.msra.mxu0 0.0
    %640 = vmatprep.subr.mxu0 0.0
    %641 = vmatpush2.msra.mxu0 0.0
    %642 = vmatprep.subr.mxu0 0.0
    %643 = vmatpush2.msra.mxu0 0.0
    %644 = vmatprep.subr.mxu0 0.0
    %645 = vmatpush2.msra.mxu0 0.0
    %646 = vmatprep.subr.mxu0 0.0
    %647 = vmatpush2.msra.mxu0 0.0
    %648 = vmatprep.subr.mxu0 0.0
    %649 = vmatpush2.msra.mxu0 0.0
    %650 = vmatprep.subr.mxu0 0.0
    %651 = vmatpush2.msra.mxu0 0.0
    %652 = vmatprep.subr.mxu0 0.0
    %653 = vmatpush2.msra.mxu0 0.0
    %654 = vmatprep.subr.mxu0 0.0
    %655 = vmatpush2.msra.mxu0 0.0
    %656 = vmatprep.mubr.f32.mxu0 0.0
    %657 = vmatmul.mubr.f32.gmra.mxu0 %v590
    %v658 = vpop.f32.mrf.mxu0
    %v659 = vadd.f32 %v56, %v658
    %v660 = vpop.f32.mrf.mxu0
    %661 = vdwg.mxu0
    %v662 = vadd.f32 %v589, %v659
    %v663 = vxor.u32 %v662, 2147483648
    %v664 = vmul.f32 %v663, 1.442695
    %v665 = vpow.pop %v664
    %v666 = vadd.f32 %v665, 1.0
    %v667 = vrcp.pop %v666
    %v668 = vmul.f32 1.0, %v667
    %670 = vrot.lane.b32.xlu0 %v659, 64
    %v671 = vpop.permute.xlu0 %670
    %v673 = vmul.f32 %v668, %v671
    %675 = vrot.lane.b32.xlu0 %v673, 64
    %v676 = vpop.permute.xlu0 %675
    %v678 = vadd.f32 %v589, %v676
    %v679 = vtanh.pop %v678
    %v680 = vsub.f32 1.0, %v668
    %682 = vrot.lane.b32.xlu0 %v679, 96
    %v683 = vpop.permute.xlu0 %682
    %v685 = vmul.f32 %v680, %v683
    %v686 = vmul.f32 %v668, %v581
    %v687 = vadd.f32 %v685, %v686
    %689 = vrot.lane.b32.xlu0 %v687, 96
    %v690 = vpop.permute.xlu0 %689
    %s692 = scalar_lea.vmem [#allocation7], 10
    %693 = vst.msk [vmem:[%s692] sm:$0x3] %vm162, %v690
    %s694 = scalar_lea.vmem [#allocation2], 12
    %v695 = vld [vmem:[%s694] sm:$0x3]
    %v696 = vsel %vm58, %v690, 0
    %698 = vmatprep.subr.mxu0 0.0
    %699 = vmatpush1.msra.mxu0 0.0
    %700 = vmatprep.subr.mxu0 0.0
    %701 = vmatpush1.msra.mxu0 0.0
    %702 = vmatprep.subr.mxu0 0.0
    %703 = vmatpush1.msra.mxu0 0.0
    %704 = vmatprep.subr.mxu0 0.0
    %705 = vmatpush1.msra.mxu0 0.0
    %706 = vmatprep.subr.mxu0 0.0
    %707 = vmatpush1.msra.mxu0 0.0
    %708 = vmatprep.subr.mxu0 0.0
    %709 = vmatpush1.msra.mxu0 0.0
    %710 = vmatprep.subr.mxu0 0.0
    %711 = vmatpush1.msra.mxu0 0.0
    %712 = vmatprep.subr.mxu0 0.0
    %713 = vmatpush1.msra.mxu0 0.0
    %714 = vmatprep.subr.mxu0 0.0
    %715 = vmatpush1.msra.mxu0 0.0
    %716 = vmatprep.subr.mxu0 0.0
    %717 = vmatpush1.msra.mxu0 0.0
    %718 = vmatprep.subr.mxu0 0.0
    %719 = vmatpush1.msra.mxu0 0.0
    %720 = vmatprep.subr.mxu0 0.0
    %721 = vmatpush1.msra.mxu0 0.0
    %722 = vmatprep.subr.mxu0 0.0
    %723 = vmatpush1.msra.mxu0 %v49
    %724 = vmatprep.subr.mxu0 0.0
    %725 = vmatpush1.msra.mxu0 %v48
    %726 = vmatprep.subr.mxu0 0.0
    %727 = vmatpush1.msra.mxu0 %v47
    %728 = vmatprep.subr.mxu0 0.0
    %729 = vmatpush1.msra.mxu0 %v46
    %730 = vmatprep.subr.mxu0 0.0
    %731 = vmatpush2.msra.mxu0 0.0
    %732 = vmatprep.subr.mxu0 0.0
    %733 = vmatpush2.msra.mxu0 0.0
    %734 = vmatprep.subr.mxu0 0.0
    %735 = vmatpush2.msra.mxu0 0.0
    %736 = vmatprep.subr.mxu0 0.0
    %737 = vmatpush2.msra.mxu0 0.0
    %738 = vmatprep.subr.mxu0 0.0
    %739 = vmatpush2.msra.mxu0 0.0
    %740 = vmatprep.subr.mxu0 0.0
    %741 = vmatpush2.msra.mxu0 0.0
    %742 = vmatprep.subr.mxu0 0.0
    %743 = vmatpush2.msra.mxu0 0.0
    %744 = vmatprep.subr.mxu0 0.0
    %745 = vmatpush2.msra.mxu0 0.0
    %746 = vmatprep.subr.mxu0 0.0
    %747 = vmatpush2.msra.mxu0 0.0
    %748 = vmatprep.subr.mxu0 0.0
    %749 = vmatpush2.msra.mxu0 0.0
    %750 = vmatprep.subr.mxu0 0.0
    %751 = vmatpush2.msra.mxu0 0.0
    %752 = vmatprep.subr.mxu0 0.0
    %753 = vmatpush2.msra.mxu0 0.0
    %754 = vmatprep.subr.mxu0 0.0
    %755 = vmatpush2.msra.mxu0 0.0
    %756 = vmatprep.subr.mxu0 0.0
    %757 = vmatpush2.msra.mxu0 0.0
    %758 = vmatprep.subr.mxu0 0.0
    %759 = vmatpush2.msra.mxu0 0.0
    %760 = vmatprep.subr.mxu0 0.0
    %761 = vmatpush2.msra.mxu0 0.0
    %762 = vmatprep.mubr.f32.mxu0 0.0
    %763 = vmatmul.mubr.f32.gmra.mxu0 %v696
    %v764 = vpop.f32.mrf.mxu0
    %v765 = vadd.f32 %v56, %v764
    %v766 = vpop.f32.mrf.mxu0
    %767 = vdwg.mxu0
    %v768 = vadd.f32 %v695, %v765
    %v769 = vxor.u32 %v768, 2147483648
    %v770 = vmul.f32 %v769, 1.442695
    %v771 = vpow.pop %v770
    %v772 = vadd.f32 %v771, 1.0
    %v773 = vrcp.pop %v772
    %v774 = vmul.f32 1.0, %v773
    %776 = vrot.lane.b32.xlu0 %v765, 64
    %v777 = vpop.permute.xlu0 %776
    %v779 = vmul.f32 %v774, %v777
    %781 = vrot.lane.b32.xlu0 %v779, 64
    %v782 = vpop.permute.xlu0 %781
    %v784 = vadd.f32 %v695, %v782
    %v785 = vtanh.pop %v784
    %v786 = vsub.f32 1.0, %v774
    %788 = vrot.lane.b32.xlu0 %v785, 96
    %v789 = vpop.permute.xlu0 %788
    %v791 = vmul.f32 %v786, %v789
    %v792 = vmul.f32 %v774, %v687
    %v793 = vadd.f32 %v791, %v792
    %795 = vrot.lane.b32.xlu0 %v793, 96
    %v796 = vpop.permute.xlu0 %795
    %s798 = scalar_lea.vmem [#allocation7], 12
    %799 = vst.msk [vmem:[%s798] sm:$0x3] %vm162, %v796
    %s800 = scalar_lea.vmem [#allocation2], 14
    %v801 = vld [vmem:[%s800] sm:$0x3]
    %v802 = vsel %vm58, %v796, 0
    %804 = vmatprep.subr.mxu0 0.0
    %805 = vmatpush1.msra.mxu0 0.0
    %806 = vmatprep.subr.mxu0 0.0
    %807 = vmatpush1.msra.mxu0 0.0
    %808 = vmatprep.subr.mxu0 0.0
    %809 = vmatpush1.msra.mxu0 0.0
    %810 = vmatprep.subr.mxu0 0.0
    %811 = vmatpush1.msra.mxu0 0.0
    %812 = vmatprep.subr.mxu0 0.0
    %813 = vmatpush1.msra.mxu0 0.0
    %814 = vmatprep.subr.mxu0 0.0
    %815 = vmatpush1.msra.mxu0 0.0
    %816 = vmatprep.subr.mxu0 0.0
    %817 = vmatpush1.msra.mxu0 0.0
    %818 = vmatprep.subr.mxu0 0.0
    %819 = vmatpush1.msra.mxu0 0.0
    %820 = vmatprep.subr.mxu0 0.0
    %821 = vmatpush1.msra.mxu0 0.0
    %822 = vmatprep.subr.mxu0 0.0
    %823 = vmatpush1.msra.mxu0 0.0
    %824 = vmatprep.subr.mxu0 0.0
    %825 = vmatpush1.msra.mxu0 0.0
    %826 = vmatprep.subr.mxu0 0.0
    %827 = vmatpush1.msra.mxu0 0.0
    %828 = vmatprep.subr.mxu0 0.0
    %829 = vmatpush1.msra.mxu0 %v49
    %830 = vmatprep.subr.mxu0 0.0
    %831 = vmatpush1.msra.mxu0 %v48
    %832 = vmatprep.subr.mxu0 0.0
    %833 = vmatpush1.msra.mxu0 %v47
    %834 = vmatprep.subr.mxu0 0.0
    %835 = vmatpush1.msra.mxu0 %v46
    %836 = vmatprep.subr.mxu0 0.0
    %837 = vmatpush2.msra.mxu0 0.0
    %838 = vmatprep.subr.mxu0 0.0
    %839 = vmatpush2.msra.mxu0 0.0
    %840 = vmatprep.subr.mxu0 0.0
    %841 = vmatpush2.msra.mxu0 0.0
    %842 = vmatprep.subr.mxu0 0.0
    %843 = vmatpush2.msra.mxu0 0.0
    %844 = vmatprep.subr.mxu0 0.0
    %845 = vmatpush2.msra.mxu0 0.0
    %846 = vmatprep.subr.mxu0 0.0
    %847 = vmatpush2.msra.mxu0 0.0
    %848 = vmatprep.subr.mxu0 0.0
    %849 = vmatpush2.msra.mxu0 0.0
    %850 = vmatprep.subr.mxu0 0.0
    %851 = vmatpush2.msra.mxu0 0.0
    %852 = vmatprep.subr.mxu0 0.0
    %853 = vmatpush2.msra.mxu0 0.0
    %854 = vmatprep.subr.mxu0 0.0
    %855 = vmatpush2.msra.mxu0 0.0
    %856 = vmatprep.subr.mxu0 0.0
    %857 = vmatpush2.msra.mxu0 0.0
    %858 = vmatprep.subr.mxu0 0.0
    %859 = vmatpush2.msra.mxu0 0.0
    %860 = vmatprep.subr.mxu0 0.0
    %861 = vmatpush2.msra.mxu0 0.0
    %862 = vmatprep.subr.mxu0 0.0
    %863 = vmatpush2.msra.mxu0 0.0
    %864 = vmatprep.subr.mxu0 0.0
    %865 = vmatpush2.msra.mxu0 0.0
    %866 = vmatprep.subr.mxu0 0.0
    %867 = vmatpush2.msra.mxu0 0.0
    %868 = vmatprep.mubr.f32.mxu0 0.0
    %869 = vmatmul.mubr.f32.gmra.mxu0 %v802
    %v870 = vpop.f32.mrf.mxu0
    %v871 = vadd.f32 %v56, %v870
    %v872 = vpop.f32.mrf.mxu0
    %873 = vdwg.mxu0
    %v874 = vadd.f32 %v801, %v871
    %v875 = vxor.u32 %v874, 2147483648
    %v876 = vmul.f32 %v875, 1.442695
    %v877 = vpow.pop %v876
    %v878 = vadd.f32 %v877, 1.0
    %v879 = vrcp.pop %v878
    %v880 = vmul.f32 1.0, %v879
    %882 = vrot.lane.b32.xlu0 %v871, 64
    %v883 = vpop.permute.xlu0 %882
    %v885 = vmul.f32 %v880, %v883
    %887 = vrot.lane.b32.xlu0 %v885, 64
    %v888 = vpop.permute.xlu0 %887
    %v890 = vadd.f32 %v801, %v888
    %v891 = vtanh.pop %v890
    %v892 = vsub.f32 1.0, %v880
    %894 = vrot.lane.b32.xlu0 %v891, 96
    %v895 = vpop.permute.xlu0 %894
    %v897 = vmul.f32 %v892, %v895
    %v898 = vmul.f32 %v880, %v793
    %v899 = vadd.f32 %v897, %v898
    %901 = vrot.lane.b32.xlu0 %v899, 96
    %v902 = vpop.permute.xlu0 %901
    %s904 = scalar_lea.vmem [#allocation7], 14
    %905 = vst.msk [vmem:[%s904] sm:$0x3] %vm162, %v902
    %906 = vst.msk [vmem:[#allocation8] sm:$0x3] %vm162, %v902
    // Predicated region
    $region22: #{tpu_custom_call.1} parent=1 // pred_check
      _
    $region23: #{tpu_custom_call.1} parent=1 // pred_check_branch
      %908 = sbr.rel (0) target = $region25
    $region24: #{tpu_custom_call.1} parent=1 // pred_region
      %s910 = ssub.s32 256, 256
      %911 = vsyncadd [#allocation4], %s910
      %s912 = sshll.u32 [#allocation7], 4
      %s913 = int_to_ptr.vmem [resolvable:$true] %s912
      %918 = dma.vmem_to_hbm [thread:$0]  %s913, 256, %s3, [#allocation4], 32, 32, 2
    $region25: #{tpu_custom_call.1} parent=1 // pred_fallthru
      _
    // Predicated region
    $region26: #{tpu_custom_call.1} parent=1 // pred_check
      _
    $region27: #{tpu_custom_call.1} parent=1 // pred_check_branch
      %920 = sbr.rel (0) target = $region29
    $region28: #{tpu_custom_call.1} parent=1 // pred_region
      %s922 = ssub.s32 32, 32
      %923 = vsyncadd [#allocation9], %s922
      %s925 = sshll.u32 [#allocation8], 4
      %s926 = int_to_ptr.vmem [resolvable:$true] %s925
      %928 = dma.vmem_to_hbm [thread:$0]  %s926, 32, %s4, [#allocation9]
    $region29: #{tpu_custom_call.1} parent=1 // pred_fallthru
      _
    // Predicated region
    $region30: #{tpu_custom_call.1} parent=1 // pred_check
      _
    $region31: #{tpu_custom_call.1} parent=1 // pred_check_branch
      %930 = sbr.rel (0) target = $region33
    $region32: #{tpu_custom_call.1} parent=1 // pred_region
      %931 = dma.done [#allocation4], 256
    $region33: #{tpu_custom_call.1} parent=1 // pred_fallthru
      _
    // Predicated region
    $region34: #{tpu_custom_call.1} parent=1 // pred_check
      _
    $region35: #{tpu_custom_call.1} parent=1 // pred_check_branch
      %933 = sbr.rel (0) target = $region37
    $region36: #{tpu_custom_call.1} parent=1 // pred_region
      %934 = dma.done [#allocation9], 32
    $region37: #{tpu_custom_call.1} parent=1 // pred_fallthru
      _
    %935 = vsyncpa [#allocation3], 1
    %936 = vsyncpa [#allocation6], 1
    %937 = vsyncpa [#allocation4], 1
    %938 = vsyncpa [#allocation9], 1

</llo_original>
